<compile_context>
chip_gen: v7x
topology: tpu7x:2x2x1
jax: 0.10.0
libtpu: 0.0.40
codegen_flags: <defaults>
</compile_context>

<pallas_src>
import functools

import jax
import jax.numpy as jnp
from jax import lax
from jax.experimental import pallas as pl
from jax.experimental.pallas import tpu as pltpu

LN_EPS = 1e-5  # PyTorch nn.LayerNorm default eps


# ----------------------------------------------------------------------------
# Parameter construction (logical params, mirroring the PyTorch __init__).
# ----------------------------------------------------------------------------
def make_critic_params(key, n_inputs=8, fc1_dims=400, fc2_dims=300, n_actions=2):
    ks = jax.random.split(key, 8)
    f1 = 1.0 / jnp.sqrt(fc1_dims)   # fc1.weight.size()[0] == fc1_dims
    f2 = 1.0 / jnp.sqrt(fc2_dims)   # fc2.weight.size()[0] == fc2_dims
    fa = 1.0 / jnp.sqrt(n_actions)  # default-ish scale for action_value
    f3 = 0.0003
    u = lambda k, shp, lim: jax.random.uniform(k, shp, jnp.float32, -lim, lim)
    return dict(
        w1=u(ks[0], (n_inputs, fc1_dims), f1),
        b1=u(ks[1], (1, fc1_dims), f1),
        g1=jnp.ones((1, fc1_dims), jnp.float32),
        be1=jnp.zeros((1, fc1_dims), jnp.float32),
        w2=u(ks[2], (fc1_dims, fc2_dims), f2),
        b2=u(ks[3], (1, fc2_dims), f2),
        g2=jnp.ones((1, fc2_dims), jnp.float32),
        be2=jnp.zeros((1, fc2_dims), jnp.float32),
        wa=u(ks[4], (n_actions, fc2_dims), fa),
        ba=u(ks[5], (1, fc2_dims), fa),
        wq=u(ks[6], (fc2_dims, 1), f3),
        bq=u(ks[7], (1, 1), f3),
    )


def pack_critic_params(p, n_inputs=8, n_actions=2, fc1=400, fc2=300,
                       fc1_pad=512, fc2_pad=384, weight_dtype=jnp.bfloat16):
    """Pad to 128 multiples (zero pad lanes), bf16 MXU weights, packed vectors."""
    pad1 = lambda v: jnp.pad(v.reshape(1, -1), ((0, 0), (0, fc1_pad - fc1)))
    pad2 = lambda v: jnp.pad(v.reshape(1, -1), ((0, 0), (0, fc2_pad - fc2)))

    # MXU operand weights stored in bf16 (halves dominant weight DMA; the dots
    # accumulate in f32 via preferred_element_type).  Pad rows/cols are zero.
    w1p = jnp.zeros((n_inputs, fc1_pad), jnp.float32).at[:, :fc1].set(p["w1"])
    wap = jnp.zeros((n_actions, fc2_pad), jnp.float32).at[:, :fc2].set(p["wa"])
    w2p = jnp.zeros((fc1_pad, fc2_pad), jnp.float32).at[:fc1, :fc2].set(p["w2"])

    # pk1 rows: [b1, gamma1, beta1]   (pad lanes zero so padded activations stay 0)
    pk1 = jnp.concatenate([pad1(p["b1"]), pad1(p["g1"]), pad1(p["be1"])], axis=0)

    # pk2 rows: [b2, gamma2, beta2, ba, wq_row, bq(broadcast slot [5,0])]
    bq_row = jnp.zeros((1, fc2_pad), jnp.float32).at[0, 0].set(p["bq"][0, 0])
    pk2 = jnp.concatenate([pad2(p["b2"]), pad2(p["g2"]), pad2(p["be2"]),
                           pad2(p["ba"]), pad2(p["wq"].reshape(1, -1)),
                           bq_row], axis=0)
    return dict(w1p=w1p.astype(weight_dtype),
                wap=wap.astype(weight_dtype),
                w2=w2p.astype(weight_dtype),
                pk1=pk1, pk2=pk2,
                fc1=fc1, fc2=fc2, fc1_pad=fc1_pad, fc2_pad=fc2_pad)


# ----------------------------------------------------------------------------
# Kernel
# ----------------------------------------------------------------------------
def _critic_kernel(state_ref, action_ref, w1_ref, wa_ref, pk1_ref, w2_ref,
                   pk2_ref, out_ref, *, inv_n1, inv_n2):
    cdt = w1_ref.dtype  # MXU operand dtype (bf16)

    # fc1: (tile_b, n_in) @ (n_in, fc1_pad)  — bf16 operands, f32 accumulate.
    h = jnp.dot(state_ref[...].astype(cdt), w1_ref[...],
                preferred_element_type=jnp.float32) + pk1_ref[0:1, :]

    # action_value branch: (tile_b, n_act) @ (n_act, fc2_pad) + ba.
    a = jnp.dot(action_ref[...].astype(cdt), wa_ref[...],
                preferred_element_type=jnp.float32) + pk2_ref[3:4, :]

    # LayerNorm 1 — single-pass stats over the TRUE 400 features (pad lanes are 0).
    s1 = jnp.sum(h, axis=-1, keepdims=True)
    s2 = jnp.sum(h * h, axis=-1, keepdims=True)
    mu = s1 * inv_n1
    var = jnp.maximum(s2 * inv_n1 - mu * mu, 0.0)
    h = (h - mu) * lax.rsqrt(var + LN_EPS) * pk1_ref[1:2, :] + pk1_ref[2:3, :]
    h = jnp.maximum(h, 0.0)                        # relu (pad lanes remain 0)

    # fc2 (dominant bf16 MXU pass) -> LayerNorm 2 (no relu yet, as in PyTorch).
    s = jnp.dot(h.astype(cdt), w2_ref[...],
                preferred_element_type=jnp.float32) + pk2_ref[0:1, :]
    t1 = jnp.sum(s, axis=-1, keepdims=True)
    t2 = jnp.sum(s * s, axis=-1, keepdims=True)
    mu2 = t1 * inv_n2
    var2 = jnp.maximum(t2 * inv_n2 - mu2 * mu2, 0.0)
    s = (s - mu2) * lax.rsqrt(var2 + LN_EPS) * pk2_ref[1:2, :] + pk2_ref[2:3, :]

    # Action-branch relu, fuse, q head as VPU multiply + lane reduce (f32).
    a = jnp.maximum(a, 0.0)
    sa = jnp.maximum(s + a, 0.0)
    q = jnp.sum(sa * pk2_ref[4:5, :], axis=-1, keepdims=True) + pk2_ref[5:6, 0:1]
    out_ref[...] = q


def _choose_tile(batch, requested):
    """Pick (tile, padded_batch).  Tiny batches -> one full tile; large batches ->
    128-multiple tiles with >=2 grid steps (keeps v7x's second TC busy)."""
    b8 = ((batch + 7) // 8) * 8
    if b8 <= 128:
        return b8, b8
    req = max(128, (int(requested) // 128) * 128)
    half_up128 = ((b8 + 255) // 256) * 128          # ~ceil(b8/2) rounded up to 128
    tile = min(req, half_up128)
    b_pad = ((b8 + tile - 1) // tile) * tile
    return tile, b_pad


def critic_forward(state, action, kp, *, tile_b=256):
    B, n_in = state.shape
    n_act = action.shape[1]
    fc1_pad, fc2_pad = kp["fc1_pad"], kp["fc2_pad"]

    tile, b_pad = _choose_tile(B, tile_b)

    state = state.astype(jnp.float32)
    action = action.astype(jnp.float32)
    if b_pad != B:   # batch-only zero pad (no feature concat); no-op when aligned
        state = jnp.pad(state, ((0, b_pad - B), (0, 0)))
        action = jnp.pad(action, ((0, b_pad - B), (0, 0)))

    kernel = functools.partial(
        _critic_kernel,
        inv_n1=1.0 / float(kp["fc1"]),
        inv_n2=1.0 / float(kp["fc2"]),
    )

    flops = 2 * b_pad * (n_in * fc1_pad + n_act * fc2_pad
                         + fc1_pad * fc2_pad + fc2_pad)
    bytes_accessed = (4 * (state.size + action.size + kp["pk1"].size
                           + kp["pk2"].size + b_pad)
                      + 2 * (kp["w1p"].size + kp["wap"].size + kp["w2"].size))

    out = pl.pallas_call(
        kernel,
        out_shape=jax.ShapeDtypeStruct((b_pad, 1), jnp.float32),
        grid=(b_pad // tile,),
        in_specs=[
            pl.BlockSpec((tile, n_in), lambda i: (i, 0)),            # state (batch-tiled)
            pl.BlockSpec((tile, n_act), lambda i: (i, 0)),           # action (batch-tiled)
            pl.BlockSpec((n_in, fc1_pad), lambda i: (0, 0)),         # w1  (resident, bf16)
            pl.BlockSpec((n_act, fc2_pad), lambda i: (0, 0)),        # wa  (resident, bf16)
            pl.BlockSpec((3, fc1_pad), lambda i: (0, 0)),            # pk1 (resident)
            pl.BlockSpec((fc1_pad, fc2_pad), lambda i: (0, 0)),      # w2  (resident, bf16)
            pl.BlockSpec((6, fc2_pad), lambda i: (0, 0)),            # pk2 (resident)
        ],
        out_specs=pl.BlockSpec((tile, 1), lambda i: (i, 0)),
        compiler_params=pltpu.CompilerParams(
            dimension_semantics=("parallel",),
            vmem_limit_bytes=32 * 1024 * 1024,
        ),
        cost_estimate=pl.CostEstimate(
            flops=flops, transcendentals=2 * b_pad, bytes_accessed=bytes_accessed),
    )(state, action, kp["w1p"], kp["wap"], kp["pk1"], kp["w2"], kp["pk2"])
    return out[:B]


# ----------------------------------------------------------------------------
# Pure-JAX reference (mirrors the PyTorch forward; optional bf16 dot operands).
# ----------------------------------------------------------------------------
def critic_forward_ref(state, action, p, dot_dtype=None):
    def mm(x, w):
        if dot_dtype is None:
            return jnp.dot(x, w)
        return jnp.dot(x.astype(dot_dtype), w.astype(dot_dtype),
                       preferred_element_type=jnp.float32)

    def ln(x, g, b):
        mu = jnp.mean(x, axis=-1, keepdims=True)
        var = jnp.mean(jnp.square(x - mu), axis=-1, keepdims=True)
        return (x - mu) * lax.rsqrt(var + LN_EPS) * g + b

    h = mm(state, p["w1"]) + p["b1"]
    h = jax.nn.relu(ln(h, p["g1"], p["be1"]))
    s = ln(mm(h, p["w2"]) + p["b2"], p["g2"], p["be2"])
    a = jax.nn.relu(mm(action, p["wa"]) + p["ba"])
    sa = jax.nn.relu(s + a)
    return sa @ p["wq"] + p["bq"]


if __name__ == "__main__":
    B, N_IN, N_ACT = 16, 8, 2
    FC1, FC2 = 400, 300

    key = jax.random.PRNGKey(0)
    k_state, k_action, k_params = jax.random.split(key, 3)
    state = jax.random.normal(k_state, (B, N_IN), jnp.float32)
    action = jax.random.normal(k_action, (B, N_ACT), jnp.float32)

    params = make_critic_params(k_params, N_IN, FC1, FC2, N_ACT)
    kparams = pack_critic_params(params, N_IN, N_ACT, FC1, FC2)

    q = critic_forward(state, action, kparams)   # default tiling: one 16-row tile at B=16
    q = jax.block_until_ready(q)
    assert q.shape == (B, 1)

    # Tight check vs. a JAX reference using the same bf16 matmul operands
    # (verifies kernel structure: layers, LN, relu ordering, biases).
    q_bf16_ref = critic_forward_ref(state, action, params, dot_dtype=jnp.bfloat16)
    assert jnp.allclose(q, q_bf16_ref, atol=1e-4, rtol=1e-2), (q, q_bf16_ref)

    # Loose check vs. the exact f32 (PyTorch-equivalent) reference; tolerance is
    # relaxed because the kernel intentionally uses bf16 MXU operands.
    q_f32_ref = critic_forward_ref(state, action, params)
    assert jnp.allclose(q, q_f32_ref, atol=1.5e-3, rtol=5e-2), (q, q_f32_ref)

    # TODO(synk): the module's Adam optimizer / device placement are training-side
    # concerns and are intentionally not part of this forward-pass kernel.
    print("KERNEL_OK")
</pallas_src>

<mosaic_0001>
module attributes {stable_mosaic.version = 11 : i64} {
  func.func @_critic_kernel(%arg0: i32, %arg1: memref<16x8xf32, #tpu.memory_space<vmem>>, %arg2: memref<16x2xf32, #tpu.memory_space<vmem>>, %arg3: memref<8x512xbf16, #tpu.memory_space<vmem>>, %arg4: memref<2x384xbf16, #tpu.memory_space<vmem>>, %arg5: memref<3x512xf32, #tpu.memory_space<vmem>>, %arg6: memref<512x384xbf16, #tpu.memory_space<vmem>>, %arg7: memref<6x384xf32, #tpu.memory_space<vmem>>, %arg8: memref<16x1xf32, #tpu.memory_space<vmem>>) attributes {dimension_semantics = [#tpu.dimension_semantics<parallel>], iteration_bounds = array<i64: 1>, scalar_prefetch = 0 : i64, scratch_operands = 0 : i64, tpu.core_type = #tpu.core_type<tc>, window_params = [{transform_indices = @transform_0, window_bounds = array<i64: 16, 8>}, {transform_indices = @transform_1, window_bounds = array<i64: 16, 2>}, {pipeline_mode = #tpu.pipeline_mode<synchronous>, transform_indices = @transform_2, window_bounds = array<i64: 8, 512>}, {pipeline_mode = #tpu.pipeline_mode<synchronous>, transform_indices = @transform_3, window_bounds = array<i64: 2, 384>}, {pipeline_mode = #tpu.pipeline_mode<synchronous>, transform_indices = @transform_4, window_bounds = array<i64: 3, 512>}, {pipeline_mode = #tpu.pipeline_mode<synchronous>, transform_indices = @transform_5, window_bounds = array<i64: 512, 384>}, {pipeline_mode = #tpu.pipeline_mode<synchronous>, transform_indices = @transform_6, window_bounds = array<i64: 6, 384>}, {transform_indices = @transform_7, window_bounds = array<i64: 16, 1>}]} {
    %c0 = arith.constant 0 : index
    %c0_0 = arith.constant 0 : index
    %0 = vector.load %arg1[%c0, %c0_0] : memref<16x8xf32, #tpu.memory_space<vmem>>, vector<16x8xf32>
    %1 = arith.truncf %0 : vector<16x8xf32> to vector<16x8xbf16>
    %c0_1 = arith.constant 0 : index
    %c0_2 = arith.constant 0 : index
    %2 = vector.load %arg3[%c0_1, %c0_2] : memref<8x512xbf16, #tpu.memory_space<vmem>>, vector<8x512xbf16>
    %cst = arith.constant dense<0.000000e+00> : vector<16x512xf32>
    %3 = tpu.matmul %1, %2, %cst {dimension_numbers = #tpu.dot_dimension_numbers<[1], [0], [0], [1], [0, 0, 1, 1], [], []>} : vector<16x8xbf16>, vector<8x512xbf16>, vector<16x512xf32> -> vector<16x512xf32>
    %c0_3 = arith.constant 0 : index
    %c0_4 = arith.constant 0 : index
    %4 = vector.load %arg5[%c0_3, %c0_4] : memref<3x512xf32, #tpu.memory_space<vmem>>, vector<1x512xf32>
    %5 = vector.broadcast %4 : vector<1x512xf32> to vector<16x512xf32>
    %6 = arith.addf %3, %5 : vector<16x512xf32>
    %c0_5 = arith.constant 0 : index
    %c0_6 = arith.constant 0 : index
    %7 = vector.load %arg2[%c0_5, %c0_6] : memref<16x2xf32, #tpu.memory_space<vmem>>, vector<16x2xf32>
    %8 = arith.truncf %7 : vector<16x2xf32> to vector<16x2xbf16>
    %c0_7 = arith.constant 0 : index
    %c0_8 = arith.constant 0 : index
    %9 = vector.load %arg4[%c0_7, %c0_8] : memref<2x384xbf16, #tpu.memory_space<vmem>>, vector<2x384xbf16>
    %cst_9 = arith.constant dense<0.000000e+00> : vector<16x384xf32>
    %10 = tpu.matmul %8, %9, %cst_9 {dimension_numbers = #tpu.dot_dimension_numbers<[1], [0], [0], [1], [0, 0, 1, 1], [], []>} : vector<16x2xbf16>, vector<2x384xbf16>, vector<16x384xf32> -> vector<16x384xf32>
    %c3 = arith.constant 3 : index
    %c0_10 = arith.constant 0 : index
    %11 = vector.load %arg7[%c3, %c0_10] : memref<6x384xf32, #tpu.memory_space<vmem>>, vector<1x384xf32>
    %12 = vector.broadcast %11 : vector<1x384xf32> to vector<16x384xf32>
    %13 = arith.addf %10, %12 : vector<16x384xf32>
    %cst_11 = arith.constant dense<0.000000e+00> : vector<16xf32>
    %14 = vector.multi_reduction <add>, %6, %cst_11 [1] : vector<16x512xf32> to vector<16xf32>
    %15 = vector.shape_cast %14 : vector<16xf32> to vector<16x1xf32>
    %16 = arith.mulf %6, %6 : vector<16x512xf32>
    %cst_12 = arith.constant dense<0.000000e+00> : vector<16xf32>
    %17 = vector.multi_reduction <add>, %16, %cst_12 [1] : vector<16x512xf32> to vector<16xf32>
    %18 = vector.shape_cast %17 : vector<16xf32> to vector<16x1xf32>
    %cst_13 = arith.constant 2.500000e-03 : f32
    %19 = vector.broadcast %cst_13 : f32 to vector<16x1xf32>
    %20 = arith.mulf %15, %19 : vector<16x1xf32>
    %cst_14 = arith.constant 2.500000e-03 : f32
    %21 = vector.broadcast %cst_14 : f32 to vector<16x1xf32>
    %22 = arith.mulf %18, %21 : vector<16x1xf32>
    %23 = arith.mulf %20, %20 : vector<16x1xf32>
    %24 = arith.subf %22, %23 : vector<16x1xf32>
    %cst_15 = arith.constant 0.000000e+00 : f32
    %25 = vector.broadcast %cst_15 : f32 to vector<16x1xf32>
    %26 = arith.maximumf %24, %25 : vector<16x1xf32>
    %27 = vector.broadcast %20 : vector<16x1xf32> to vector<16x512xf32>
    %28 = arith.subf %6, %27 : vector<16x512xf32>
    %cst_16 = arith.constant 9.99999974E-6 : f32
    %29 = vector.broadcast %cst_16 : f32 to vector<16x1xf32>
    %30 = arith.addf %26, %29 : vector<16x1xf32>
    %31 = math.rsqrt %30 : vector<16x1xf32>
    %32 = vector.broadcast %31 : vector<16x1xf32> to vector<16x512xf32>
    %33 = arith.mulf %28, %32 : vector<16x512xf32>
    %c1 = arith.constant 1 : index
    %c0_17 = arith.constant 0 : index
    %34 = vector.load %arg5[%c1, %c0_17] : memref<3x512xf32, #tpu.memory_space<vmem>>, vector<1x512xf32>
    %35 = vector.broadcast %34 : vector<1x512xf32> to vector<16x512xf32>
    %36 = arith.mulf %33, %35 : vector<16x512xf32>
    %c2 = arith.constant 2 : index
    %c0_18 = arith.constant 0 : index
    %37 = vector.load %arg5[%c2, %c0_18] : memref<3x512xf32, #tpu.memory_space<vmem>>, vector<1x512xf32>
    %38 = vector.broadcast %37 : vector<1x512xf32> to vector<16x512xf32>
    %39 = arith.addf %36, %38 : vector<16x512xf32>
    %cst_19 = arith.constant 0.000000e+00 : f32
    %40 = vector.broadcast %cst_19 : f32 to vector<16x512xf32>
    %41 = arith.maximumf %39, %40 : vector<16x512xf32>
    %42 = arith.truncf %41 : vector<16x512xf32> to vector<16x512xbf16>
    %c0_20 = arith.constant 0 : index
    %c0_21 = arith.constant 0 : index
    %43 = vector.load %arg6[%c0_20, %c0_21] : memref<512x384xbf16, #tpu.memory_space<vmem>>, vector<512x384xbf16>
    %cst_22 = arith.constant dense<0.000000e+00> : vector<16x384xf32>
    %44 = tpu.matmul %42, %43, %cst_22 {dimension_numbers = #tpu.dot_dimension_numbers<[1], [0], [0], [1], [0, 0, 1, 1], [], []>} : vector<16x512xbf16>, vector<512x384xbf16>, vector<16x384xf32> -> vector<16x384xf32>
    %c0_23 = arith.constant 0 : index
    %c0_24 = arith.constant 0 : index
    %45 = vector.load %arg7[%c0_23, %c0_24] : memref<6x384xf32, #tpu.memory_space<vmem>>, vector<1x384xf32>
    %46 = vector.broadcast %45 : vector<1x384xf32> to vector<16x384xf32>
    %47 = arith.addf %44, %46 : vector<16x384xf32>
    %cst_25 = arith.constant dense<0.000000e+00> : vector<16xf32>
    %48 = vector.multi_reduction <add>, %47, %cst_25 [1] : vector<16x384xf32> to vector<16xf32>
    %49 = vector.shape_cast %48 : vector<16xf32> to vector<16x1xf32>
    %50 = arith.mulf %47, %47 : vector<16x384xf32>
    %cst_26 = arith.constant dense<0.000000e+00> : vector<16xf32>
    %51 = vector.multi_reduction <add>, %50, %cst_26 [1] : vector<16x384xf32> to vector<16xf32>
    %52 = vector.shape_cast %51 : vector<16xf32> to vector<16x1xf32>
    %cst_27 = arith.constant 0.00333333341 : f32
    %53 = vector.broadcast %cst_27 : f32 to vector<16x1xf32>
    %54 = arith.mulf %49, %53 : vector<16x1xf32>
    %cst_28 = arith.constant 0.00333333341 : f32
    %55 = vector.broadcast %cst_28 : f32 to vector<16x1xf32>
    %56 = arith.mulf %52, %55 : vector<16x1xf32>
    %57 = arith.mulf %54, %54 : vector<16x1xf32>
    %58 = arith.subf %56, %57 : vector<16x1xf32>
    %cst_29 = arith.constant 0.000000e+00 : f32
    %59 = vector.broadcast %cst_29 : f32 to vector<16x1xf32>
    %60 = arith.maximumf %58, %59 : vector<16x1xf32>
    %61 = vector.broadcast %54 : vector<16x1xf32> to vector<16x384xf32>
    %62 = arith.subf %47, %61 : vector<16x384xf32>
    %cst_30 = arith.constant 9.99999974E-6 : f32
    %63 = vector.broadcast %cst_30 : f32 to vector<16x1xf32>
    %64 = arith.addf %60, %63 : vector<16x1xf32>
    %65 = math.rsqrt %64 : vector<16x1xf32>
    %66 = vector.broadcast %65 : vector<16x1xf32> to vector<16x384xf32>
    %67 = arith.mulf %62, %66 : vector<16x384xf32>
    %c1_31 = arith.constant 1 : index
    %c0_32 = arith.constant 0 : index
    %68 = vector.load %arg7[%c1_31, %c0_32] : memref<6x384xf32, #tpu.memory_space<vmem>>, vector<1x384xf32>
    %69 = vector.broadcast %68 : vector<1x384xf32> to vector<16x384xf32>
    %70 = arith.mulf %67, %69 : vector<16x384xf32>
    %c2_33 = arith.constant 2 : index
    %c0_34 = arith.constant 0 : index
    %71 = vector.load %arg7[%c2_33, %c0_34] : memref<6x384xf32, #tpu.memory_space<vmem>>, vector<1x384xf32>
    %72 = vector.broadcast %71 : vector<1x384xf32> to vector<16x384xf32>
    %73 = arith.addf %70, %72 : vector<16x384xf32>
    %cst_35 = arith.constant 0.000000e+00 : f32
    %74 = vector.broadcast %cst_35 : f32 to vector<16x384xf32>
    %75 = arith.maximumf %13, %74 : vector<16x384xf32>
    %76 = arith.addf %73, %75 : vector<16x384xf32>
    %cst_36 = arith.constant 0.000000e+00 : f32
    %77 = vector.broadcast %cst_36 : f32 to vector<16x384xf32>
    %78 = arith.maximumf %76, %77 : vector<16x384xf32>
    %c4 = arith.constant 4 : index
    %c0_37 = arith.constant 0 : index
    %79 = vector.load %arg7[%c4, %c0_37] : memref<6x384xf32, #tpu.memory_space<vmem>>, vector<1x384xf32>
    %80 = vector.broadcast %79 : vector<1x384xf32> to vector<16x384xf32>
    %81 = arith.mulf %78, %80 : vector<16x384xf32>
    %cst_38 = arith.constant dense<0.000000e+00> : vector<16xf32>
    %82 = vector.multi_reduction <add>, %81, %cst_38 [1] : vector<16x384xf32> to vector<16xf32>
    %83 = vector.shape_cast %82 : vector<16xf32> to vector<16x1xf32>
    %c5 = arith.constant 5 : index
    %c0_39 = arith.constant 0 : index
    %84 = vector.load %arg7[%c5, %c0_39] : memref<6x384xf32, #tpu.memory_space<vmem>>, vector<1x1xf32>
    %85 = vector.broadcast %84 : vector<1x1xf32> to vector<16x1xf32>
    %86 = arith.addf %83, %85 : vector<16x1xf32>
    %c0_40 = arith.constant 0 : index
    %c0_41 = arith.constant 0 : index
    %87 = vector.load %arg8[%c0_40, %c0_41] : memref<16x1xf32, #tpu.memory_space<vmem>>, vector<16x1xf32>
    tpu.vector_store %arg8[%c0_40, %c0_41], %86 {strides = array<i32>} : memref<16x1xf32, #tpu.memory_space<vmem>>, vector<16x1xf32>,
    return
  }
  func.func @transform_0(%arg0: i32) -> (i32, i32) {
    %c0_i32 = arith.constant 0 : i32
    %c0_i32_0 = arith.constant 0 : i32
    return %arg0, %c0_i32 : i32, i32
  }
  func.func @transform_1(%arg0: i32) -> (i32, i32) {
    %c0_i32 = arith.constant 0 : i32
    %c0_i32_0 = arith.constant 0 : i32
    return %arg0, %c0_i32 : i32, i32
  }
  func.func @transform_2(%arg0: i32) -> (i32, i32) {
    %c0_i32 = arith.constant 0 : i32
    %c0_i32_0 = arith.constant 0 : i32
    %c0_i32_1 = arith.constant 0 : i32
    return %c0_i32, %c0_i32_0 : i32, i32
  }
  func.func @transform_3(%arg0: i32) -> (i32, i32) {
    %c0_i32 = arith.constant 0 : i32
    %c0_i32_0 = arith.constant 0 : i32
    %c0_i32_1 = arith.constant 0 : i32
    return %c0_i32, %c0_i32_0 : i32, i32
  }
  func.func @transform_4(%arg0: i32) -> (i32, i32) {
    %c0_i32 = arith.constant 0 : i32
    %c0_i32_0 = arith.constant 0 : i32
    %c0_i32_1 = arith.constant 0 : i32
    return %c0_i32, %c0_i32_0 : i32, i32
  }
  func.func @transform_5(%arg0: i32) -> (i32, i32) {
    %c0_i32 = arith.constant 0 : i32
    %c0_i32_0 = arith.constant 0 : i32
    %c0_i32_1 = arith.constant 0 : i32
    return %c0_i32, %c0_i32_0 : i32, i32
  }
  func.func @transform_6(%arg0: i32) -> (i32, i32) {
    %c0_i32 = arith.constant 0 : i32
    %c0_i32_0 = arith.constant 0 : i32
    %c0_i32_1 = arith.constant 0 : i32
    return %c0_i32, %c0_i32_0 : i32, i32
  }
  func.func @transform_7(%arg0: i32) -> (i32, i32) {
    %c0_i32 = arith.constant 0 : i32
    %c0_i32_0 = arith.constant 0 : i32
    return %arg0, %c0_i32 : i32, i32
  }
}

</mosaic_0001>

<llo_original>
// kernel: tpu_custom_call.1
$region0: #{tpu_custom_call.1}
  #allocation0 [shape = 'u32[]', space=smem, size = 0x4, offset = 0x4, fixed_abs, tag = 'smem constant byte address 0x4 - core index']
  #allocation1 [shape = 'u32[144,128]{1,0:T(1,128)}', space=vmem, size = 0x12000, scoped, tag = 'internal scratch']
  %s0 = inlined_call_operand.vmem [shape: f32[16,8], index: 0, kind: input, shape index: {}]
  %s1 = inlined_call_operand.vmem [shape: f32[16,2], index: 1, kind: input, shape index: {}]
  %s2 = inlined_call_operand.vmem [shape: bf16[8,512], index: 2, kind: input, shape index: {}]
  %s3 = inlined_call_operand.hbm [shape: bf16[2,384], index: 3, kind: input, shape index: {}]
  %s4 = inlined_call_operand.vmem [shape: f32[3,512], index: 4, kind: input, shape index: {}]
  %s5 = inlined_call_operand.hbm [shape: bf16[512,384], index: 5, kind: input, shape index: {}]
  %s6 = inlined_call_operand.vmem [shape: f32[6,384], index: 6, kind: input, shape index: {}]
  %s7 = inlined_call_operand.vmem [shape: f32[16,1], index: 7, kind: output, shape index: {}]
  %s8 = sld [smem:[#allocation0]]
  $region46: #{tpu_custom_call.1} parent=0
    _
  %s10 = ssub.s32 1, %s8
  %s11 = scalar_select 0, %s10, %s8
  $region1: #{tpu_custom_call.1} parent=0
    #allocation2 [shape = 'u8[1536]{0}', space=vmem, size = 0x800, scoped, tag = 'input window, operand 3, single buffered']
    #allocation3 [shape = 's32[1]{0}', space=sflag, size = 0x4, scoped, tag = 'scoped memory for tpu_custom_call.1']
    #allocation4 [shape = 'u8[393216]{0}', space=vmem, size = 0x60000, scoped, tag = 'input window, operand 5, single buffered']
    #allocation5 [shape = 's32[1]{0}', space=sflag, size = 0x4, scoped, tag = 'scoped memory for tpu_custom_call.1']
    %12 = vsyncpa [#allocation3], 0
    %13 = vsyncpa [#allocation5], 0
    // Predicated region
    $region2: #{tpu_custom_call.1} parent=1 // pred_check
      _
    $region3: #{tpu_custom_call.1} parent=1 // pred_check_branch
      %15 = sbr.rel (0) target = $region5
    $region4: #{tpu_custom_call.1} parent=1 // pred_region
      _
    $region5: #{tpu_custom_call.1} parent=1 // pred_fallthru
      _
    // Predicated region
    $region6: #{tpu_custom_call.1} parent=1 // pred_check
      _
    $region7: #{tpu_custom_call.1} parent=1 // pred_check_branch
      %17 = sbr.rel (0) target = $region9
    $region8: #{tpu_custom_call.1} parent=1 // pred_region
      _
    $region9: #{tpu_custom_call.1} parent=1 // pred_fallthru
      _
    // Predicated region
    $region10: #{tpu_custom_call.1} parent=1 // pred_check
      _
    $region11: #{tpu_custom_call.1} parent=1 // pred_check_branch
      %19 = sbr.rel (0) target = $region13
    $region12: #{tpu_custom_call.1} parent=1 // pred_region
      _
    $region13: #{tpu_custom_call.1} parent=1 // pred_fallthru
      _
    // Predicated region
    $region14: #{tpu_custom_call.1} parent=1 // pred_check
      _
    $region15: #{tpu_custom_call.1} parent=1 // pred_check_branch
      %21 = sbr.rel (0) target = $region17
    $region16: #{tpu_custom_call.1} parent=1 // pred_region
      %s23 = ssub.s32 48, 48
      %24 = vsyncadd [#allocation3], %s23
      %s26 = sshll.u32 [#allocation2], 4
      %s27 = int_to_ptr.vmem [resolvable:$true] %s26
      %29 = dma.hbm_to_vmem [thread:$0]  %s3, 48, %s27, [#allocation3]
    $region17: #{tpu_custom_call.1} parent=1 // pred_fallthru
      _
    // Predicated region
    $region18: #{tpu_custom_call.1} parent=1 // pred_check
      _
    $region19: #{tpu_custom_call.1} parent=1 // pred_check_branch
      %31 = sbr.rel (0) target = $region21
    $region20: #{tpu_custom_call.1} parent=1 // pred_region
      _
    $region21: #{tpu_custom_call.1} parent=1 // pred_fallthru
      _
    // Predicated region
    $region22: #{tpu_custom_call.1} parent=1 // pred_check
      _
    $region23: #{tpu_custom_call.1} parent=1 // pred_check_branch
      %33 = sbr.rel (0) target = $region25
    $region24: #{tpu_custom_call.1} parent=1 // pred_region
      %s35 = ssub.s32 12288, 12288
      %36 = vsyncadd [#allocation5], %s35
      %s37 = sshll.u32 [#allocation4], 4
      %s38 = int_to_ptr.vmem [resolvable:$true] %s37
      %43 = dma.hbm_to_vmem [thread:$0]  %s5, 12288, %s38, [#allocation5], 192, 192, 12
    $region25: #{tpu_custom_call.1} parent=1 // pred_fallthru
      _
    // Predicated region
    $region26: #{tpu_custom_call.1} parent=1 // pred_check
      _
    $region27: #{tpu_custom_call.1} parent=1 // pred_check_branch
      %45 = sbr.rel (0) target = $region29
    $region28: #{tpu_custom_call.1} parent=1 // pred_region
      _
    $region29: #{tpu_custom_call.1} parent=1 // pred_fallthru
      _
    // Predicated region
    $region30: #{tpu_custom_call.1} parent=1 // pred_check
      _
    $region31: #{tpu_custom_call.1} parent=1 // pred_check_branch
      %47 = sbr.rel (0) target = $region33
    $region32: #{tpu_custom_call.1} parent=1 // pred_region
      %48 = dma.done [#allocation3], 48
    $region33: #{tpu_custom_call.1} parent=1 // pred_fallthru
      _
    // Predicated region
    $region34: #{tpu_custom_call.1} parent=1 // pred_check
      _
    $region35: #{tpu_custom_call.1} parent=1 // pred_check_branch
      %50 = sbr.rel (0) target = $region37
    $region36: #{tpu_custom_call.1} parent=1 // pred_region
      %51 = dma.done [#allocation5], 12288
    $region37: #{tpu_custom_call.1} parent=1 // pred_fallthru
      _
    %v53 = vld [vmem:[%s0] sm:$0xff]
    %v54 = vld [vmem:[%s0 + $0x8] sm:$0xff]
    %v55 = vpack.c.bf16 %v54, %v53
    %v56 = vld [vmem:[%s2] sm:$0xff]
    %v57 = vld [vmem:[%s2 + $0x8] sm:$0xff]
    %v58 = vld [vmem:[%s4] ss:$4 sm:$0xf]
    %v60 = vlaneseq
    %v61 = vshrl.u32 %v60, 7
    %v62 = vsub.s32 0, %v61
    %v63 = vrot.slane %v58, %v62
    %v64 = vlaneseq
    %v65 = vshrl.u32 %v64, 7
    %v66 = vsub.s32 1, %v65
    %v67 = vrot.slane %v58, %v66
    %v68 = vlaneseq
    %v69 = vshrl.u32 %v68, 7
    %v70 = vsub.s32 2, %v69
    %v71 = vrot.slane %v58, %v70
    %v72 = vlaneseq
    %v73 = vshrl.u32 %v72, 7
    %v74 = vsub.s32 3, %v73
    %v75 = vrot.slane %v58, %v74
    %v82 = vunpack.c.l.b16 %v56
    %v83 = vunpack.c.h.b16 %v56
    %v84 = vunpack.c.l.b16 %v57
    %v85 = vunpack.c.h.b16 %v57
    %v86 = vpack.c.b16 %v82, %v82
    %v87 = vpack.c.b16 %v83, %v83
    %v88 = vpack.c.b16 %v84, %v84
    %v89 = vpack.c.b16 %v85, %v85
    %vm90 = vcmask 64512
    %v92 = vsel %vm90, %v55, 0
    %vm94 = vcmask 1043456
    %v96 = vsel %vm94, %v86, 0
    %v99 = vsel %vm94, %v87, 0
    %v102 = vsel %vm94, %v88, 0
    %v105 = vsel %vm94, %v89, 0
    %107 = vmatprep.subr.bf16.mxu0 %v99
    %108 = vmatpush1.bf16.msra.mxu0 %v96
    %109 = vmatprep.subr.bf16.mxu0 0
    %110 = vmatpush1.bf16.msra.mxu0 0
    %111 = vmatprep.subr.bf16.mxu0 0
    %112 = vmatpush1.bf16.msra.mxu0 0
    %113 = vmatprep.subr.bf16.mxu0 0
    %114 = vmatpush1.bf16.msra.mxu0 0
    %115 = vmatprep.subr.bf16.mxu0 0
    %116 = vmatpush1.bf16.msra.mxu0 0
    %117 = vmatprep.subr.bf16.mxu0 0
    %118 = vmatpush1.bf16.msra.mxu0 0
    %119 = vmatprep.subr.bf16.mxu0 0
    %120 = vmatpush1.bf16.msra.mxu0 0
    %121 = vmatprep.subr.bf16.mxu0 0
    %122 = vmatpush1.bf16.msra.mxu0 0
    %123 = vmatprep.subr.bf16.mxu0 0
    %124 = vmatpush1.bf16.msra.mxu0 0
    %125 = vmatprep.subr.bf16.mxu0 0
    %126 = vmatpush1.bf16.msra.mxu0 0
    %127 = vmatprep.subr.bf16.mxu0 0
    %128 = vmatpush1.bf16.msra.mxu0 0
    %129 = vmatprep.subr.bf16.mxu0 0
    %130 = vmatpush1.bf16.msra.mxu0 0
    %131 = vmatprep.subr.bf16.mxu0 0
    %132 = vmatpush1.bf16.msra.mxu0 0
    %133 = vmatprep.subr.bf16.mxu0 0
    %134 = vmatpush1.bf16.msra.mxu0 0
    %135 = vmatprep.subr.bf16.mxu0 0
    %136 = vmatpush1.bf16.msra.mxu0 0
    %137 = vmatprep.subr.bf16.mxu0 0
    %138 = vmatpush1.bf16.msra.mxu0 0
    %139 = vmatprep.mubr.bf16.mxu0 0
    %140 = vmatmul.mubr.bf16.gmra.mrb[0].mxu0 %v92
    %v141 = vpop.f32.mrb[0].mxu0
    %v142 = vadd.f32 %v63, %v141
    %v143 = vpop.f32.mrb[0].mxu0
    %v144 = vadd.f32 %v67, %v143
    %v145 = vpop.f32.mrb[0].mxu0
    %v146 = vadd.f32 %v63, %v145
    %v147 = vpop.f32.mrb[0].mxu0
    %v148 = vadd.f32 %v67, %v147
    %149 = vdwg.mxu0
    %150 = vmatprep.subr.bf16.mxu0 %v105
    %151 = vmatpush1.bf16.msra.mxu0 %v102
    %152 = vmatprep.subr.bf16.mxu0 0
    %153 = vmatpush1.bf16.msra.mxu0 0
    %154 = vmatprep.subr.bf16.mxu0 0
    %155 = vmatpush1.bf16.msra.mxu0 0
    %156 = vmatprep.subr.bf16.mxu0 0
    %157 = vmatpush1.bf16.msra.mxu0 0
    %158 = vmatprep.subr.bf16.mxu0 0
    %159 = vmatpush1.bf16.msra.mxu0 0
    %160 = vmatprep.subr.bf16.mxu0 0
    %161 = vmatpush1.bf16.msra.mxu0 0
    %162 = vmatprep.subr.bf16.mxu0 0
    %163 = vmatpush1.bf16.msra.mxu0 0
    %164 = vmatprep.subr.bf16.mxu0 0
    %165 = vmatpush1.bf16.msra.mxu0 0
    %166 = vmatprep.subr.bf16.mxu0 0
    %167 = vmatpush1.bf16.msra.mxu0 0
    %168 = vmatprep.subr.bf16.mxu0 0
    %169 = vmatpush1.bf16.msra.mxu0 0
    %170 = vmatprep.subr.bf16.mxu0 0
    %171 = vmatpush1.bf16.msra.mxu0 0
    %172 = vmatprep.subr.bf16.mxu0 0
    %173 = vmatpush1.bf16.msra.mxu0 0
    %174 = vmatprep.subr.bf16.mxu0 0
    %175 = vmatpush1.bf16.msra.mxu0 0
    %176 = vmatprep.subr.bf16.mxu0 0
    %177 = vmatpush1.bf16.msra.mxu0 0
    %178 = vmatprep.subr.bf16.mxu0 0
    %179 = vmatpush1.bf16.msra.mxu0 0
    %180 = vmatprep.subr.bf16.mxu0 0
    %181 = vmatpush1.bf16.msra.mxu0 0
    %182 = vmatprep.mubr.bf16.mxu0 0
    %183 = vmatmul.mubr.bf16.gmra.mrb[0].mxu0 %v92
    %v184 = vpop.f32.mrb[0].mxu0
    %v185 = vadd.f32 %v71, %v184
    %v186 = vpop.f32.mrb[0].mxu0
    %v187 = vadd.f32 %v75, %v186
    %v188 = vpop.f32.mrb[0].mxu0
    %v189 = vadd.f32 %v71, %v188
    %v190 = vpop.f32.mrb[0].mxu0
    %v191 = vadd.f32 %v75, %v190
    %192 = vdwg.mxu0
    %v193 = vld [vmem:[%s1] sm:$0xff]
    %v194 = vld [vmem:[%s1 + $0x8] sm:$0xff]
    %v195 = vpack.c.bf16 %v194, %v193
    %v196 = vld [vmem:[#allocation2] sm:$0x7]
    %s197 = scalar_lea.vmem %s6, 3
    %v198 = vld [vmem:[%s197] ss:$8 sm:$0x7]
    %v200 = vlaneseq
    %v201 = vshrl.u32 %v200, 7
    %v202 = vsub.s32 0, %v201
    %v203 = vrot.slane %v198, %v202
    %v204 = vlaneseq
    %v205 = vshrl.u32 %v204, 7
    %v206 = vsub.s32 1, %v205
    %v207 = vrot.slane %v198, %v206
    %v208 = vlaneseq
    %v209 = vshrl.u32 %v208, 7
    %v210 = vsub.s32 2, %v209
    %v211 = vrot.slane %v198, %v210
    %v217 = vunpack.c.l.s4 1966171168
    %v218 = vunpack.c.0.s8 %v217
    %v219 = vlaneseq
    %v220 = vshrl.u32 %v219, 7
    %v221 = vsub.s32 %v218, %v220
    %v222 = vrot.slane %v196, %v221
    %v223 = vcombine.high %v222, %v222
    %v225 = vunpack.c.l.s4 1966171168
    %v226 = vunpack.c.0.s8 %v225
    %v227 = vlaneseq
    %v228 = vshrl.u32 %v227, 7
    %v229 = vsub.s32 %v226, %v228
    %v230 = vrot.slane %v222, %v229
    %v232 = vunpack.c.l.s4 1966171168
    %v233 = vunpack.c.0.s8 %v232
    %v234 = vlaneseq
    %v235 = vshrl.u32 %v234, 7
    %v236 = vsub.s32 %v233, %v235
    %v237 = vrot.slane %v223, %v236
    %v238 = vcombine.high %v230, %v230
    %vm239 = vcmask 15360
    %v241 = vsel %vm239, %v195, 0
    %vm243 = vcmask 1040384
    %v245 = vsel %vm243, %v230, 0
    %v248 = vsel %vm243, %v237, 0
    %v251 = vsel %vm243, %v238, 0
    %253 = vmatprep.subr.bf16.mxu0 %v248
    %254 = vmatpush1.bf16.msra.mxu0 %v245
    %255 = vmatprep.subr.bf16.mxu0 0
    %256 = vmatpush1.bf16.msra.mxu0 0
    %257 = vmatprep.subr.bf16.mxu0 0
    %258 = vmatpush1.bf16.msra.mxu0 0
    %259 = vmatprep.subr.bf16.mxu0 0
    %260 = vmatpush1.bf16.msra.mxu0 0
    %261 = vmatprep.subr.bf16.mxu0 0
    %262 = vmatpush1.bf16.msra.mxu0 0
    %263 = vmatprep.subr.bf16.mxu0 0
    %264 = vmatpush1.bf16.msra.mxu0 0
    %265 = vmatprep.subr.bf16.mxu0 0
    %266 = vmatpush1.bf16.msra.mxu0 0
    %267 = vmatprep.subr.bf16.mxu0 0
    %268 = vmatpush1.bf16.msra.mxu0 0
    %269 = vmatprep.subr.bf16.mxu0 0
    %270 = vmatpush1.bf16.msra.mxu0 0
    %271 = vmatprep.subr.bf16.mxu0 0
    %272 = vmatpush1.bf16.msra.mxu0 0
    %273 = vmatprep.subr.bf16.mxu0 0
    %274 = vmatpush1.bf16.msra.mxu0 0
    %275 = vmatprep.subr.bf16.mxu0 0
    %276 = vmatpush1.bf16.msra.mxu0 0
    %277 = vmatprep.subr.bf16.mxu0 0
    %278 = vmatpush1.bf16.msra.mxu0 0
    %279 = vmatprep.subr.bf16.mxu0 0
    %280 = vmatpush1.bf16.msra.mxu0 0
    %281 = vmatprep.subr.bf16.mxu0 0
    %282 = vmatpush1.bf16.msra.mxu0 0
    %283 = vmatprep.subr.bf16.mxu0 0
    %284 = vmatpush1.bf16.msra.mxu0 0
    %285 = vmatprep.mubr.bf16.mxu0 0
    %286 = vmatmul.mubr.bf16.gmra.mrb[0].mxu0 %v241
    %v287 = vpop.f32.mrb[0].mxu0
    %v288 = vadd.f32 %v203, %v287
    %v289 = vpop.f32.mrb[0].mxu0
    %v290 = vadd.f32 %v207, %v289
    %v291 = vpop.f32.mrb[0].mxu0
    %v292 = vadd.f32 %v203, %v291
    %v293 = vpop.f32.mrb[0].mxu0
    %v294 = vadd.f32 %v207, %v293
    %295 = vdwg.mxu0
    %296 = vmatprep.subr.bf16.mxu0 0
    %297 = vmatpush1.bf16.msra.mxu0 %v251
    %298 = vmatprep.subr.bf16.mxu0 0
    %299 = vmatpush1.bf16.msra.mxu0 0
    %300 = vmatprep.subr.bf16.mxu0 0
    %301 = vmatpush1.bf16.msra.mxu0 0
    %302 = vmatprep.subr.bf16.mxu0 0
    %303 = vmatpush1.bf16.msra.mxu0 0
    %304 = vmatprep.subr.bf16.mxu0 0
    %305 = vmatpush1.bf16.msra.mxu0 0
    %306 = vmatprep.subr.bf16.mxu0 0
    %307 = vmatpush1.bf16.msra.mxu0 0
    %308 = vmatprep.subr.bf16.mxu0 0
    %309 = vmatpush1.bf16.msra.mxu0 0
    %310 = vmatprep.subr.bf16.mxu0 0
    %311 = vmatpush1.bf16.msra.mxu0 0
    %312 = vmatprep.subr.bf16.mxu0 0
    %313 = vmatpush1.bf16.msra.mxu0 0
    %314 = vmatprep.subr.bf16.mxu0 0
    %315 = vmatpush1.bf16.msra.mxu0 0
    %316 = vmatprep.subr.bf16.mxu0 0
    %317 = vmatpush1.bf16.msra.mxu0 0
    %318 = vmatprep.subr.bf16.mxu0 0
    %319 = vmatpush1.bf16.msra.mxu0 0
    %320 = vmatprep.subr.bf16.mxu0 0
    %321 = vmatpush1.bf16.msra.mxu0 0
    %322 = vmatprep.subr.bf16.mxu0 0
    %323 = vmatpush1.bf16.msra.mxu0 0
    %324 = vmatprep.subr.bf16.mxu0 0
    %325 = vmatpush1.bf16.msra.mxu0 0
    %326 = vmatprep.subr.bf16.mxu0 0
    %327 = vmatpush1.bf16.msra.mxu0 0
    %328 = vmatprep.mubr.bf16.mxu0 0
    %329 = vmatmul.mubr.bf16.gmra.mrb[0].mxu0 %v241
    %v330 = vpop.f32.mrb[0].mxu0
    %v331 = vadd.f32 %v211, %v330
    %v332 = vpop.f32.mrb[0].mxu0
    %v333 = vpop.f32.mrb[0].mxu0
    %v334 = vadd.f32 %v211, %v333
    %v335 = vpop.f32.mrb[0].mxu0
    %336 = vdwg.mxu0
    %v337 = vadd.f32 %v142, %v144
    %v338 = vadd.f32 %v337, %v185
    %v339 = vadd.f32 %v338, %v187
    %340 = vadd.xlane.f32.xlu0 %v339
    %v341 = vpop.xlane.xlu0 %340
    %v342 = vadd.f32 %v146, %v148
    %v343 = vadd.f32 %v342, %v189
    %v344 = vadd.f32 %v343, %v191
    %345 = vadd.xlane.f32.xlu0 %v344
    %v346 = vpop.xlane.xlu0 %345
    %v347 = vmul.f32 %v142, %v142
    %v348 = vmul.f32 %v144, %v144
    %v349 = vmul.f32 %v185, %v185
    %v350 = vmul.f32 %v187, %v187
    %v351 = vmul.f32 %v146, %v146
    %v352 = vmul.f32 %v148, %v148
    %v353 = vmul.f32 %v189, %v189
    %v354 = vmul.f32 %v191, %v191
    %v355 = vadd.f32 %v347, %v348
    %v356 = vadd.f32 %v355, %v349
    %v357 = vadd.f32 %v356, %v350
    %358 = vadd.xlane.f32.xlu0 %v357
    %v359 = vpop.xlane.xlu0 %358
    %v360 = vadd.f32 %v351, %v352
    %v361 = vadd.f32 %v360, %v353
    %v362 = vadd.f32 %v361, %v354
    %363 = vadd.xlane.f32.xlu0 %v362
    %v364 = vpop.xlane.xlu0 %363
    %v365 = vmul.f32 %v341, 0.0025
    %v366 = vmul.f32 %v346, 0.0025
    %v367 = vmul.f32 %v359, 0.0025
    %v368 = vmul.f32 %v364, 0.0025
    %v369 = vmul.f32 %v365, %v365
    %v370 = vmul.f32 %v366, %v366
    %v371 = vsub.f32 %v367, %v369
    %v372 = vsub.f32 %v368, %v370
    %v373 = vmax.f32 %v371, 0.0
    %v374 = vmax.f32 %v372, 0.0
    %v375 = vsub.f32 %v142, %v365
    %v376 = vsub.f32 %v144, %v365
    %v377 = vsub.f32 %v185, %v365
    %v378 = vsub.f32 %v187, %v365
    %v379 = vsub.f32 %v146, %v366
    %v380 = vsub.f32 %v148, %v366
    %v381 = vsub.f32 %v189, %v366
    %v382 = vsub.f32 %v191, %v366
    %v383 = vadd.f32 %v373, 1e-05
    %v384 = vadd.f32 %v374, 1e-05
    %v385 = vrsqrt.pop %v383
    %v386 = vrsqrt.pop %v384
    %v387 = vmul.f32 %v375, %v385
    %v388 = vmul.f32 %v376, %v385
    %v389 = vmul.f32 %v377, %v385
    %v390 = vmul.f32 %v378, %v385
    %v391 = vmul.f32 %v379, %v386
    %v392 = vmul.f32 %v380, %v386
    %v393 = vmul.f32 %v381, %v386
    %v394 = vmul.f32 %v382, %v386
    %s395 = scalar_lea.vmem %s4, 1
    %v396 = vld [vmem:[%s395] ss:$4 sm:$0xf]
    %v398 = vlaneseq
    %v399 = vshrl.u32 %v398, 7
    %v400 = vsub.s32 0, %v399
    %v401 = vrot.slane %v396, %v400
    %v402 = vlaneseq
    %v403 = vshrl.u32 %v402, 7
    %v404 = vsub.s32 1, %v403
    %v405 = vrot.slane %v396, %v404
    %v406 = vlaneseq
    %v407 = vshrl.u32 %v406, 7
    %v408 = vsub.s32 2, %v407
    %v409 = vrot.slane %v396, %v408
    %v410 = vlaneseq
    %v411 = vshrl.u32 %v410, 7
    %v412 = vsub.s32 3, %v411
    %v413 = vrot.slane %v396, %v412
    %v418 = vmul.f32 %v387, %v401
    %v419 = vmul.f32 %v388, %v405
    %v420 = vmul.f32 %v389, %v409
    %v421 = vmul.f32 %v390, %v413
    %v422 = vmul.f32 %v391, %v401
    %v423 = vmul.f32 %v392, %v405
    %v424 = vmul.f32 %v393, %v409
    %v425 = vmul.f32 %v394, %v413
    %s426 = scalar_lea.vmem %s4, 2
    %v427 = vld [vmem:[%s426] ss:$4 sm:$0xf]
    %v429 = vlaneseq
    %v430 = vshrl.u32 %v429, 7
    %v431 = vsub.s32 0, %v430
    %v432 = vrot.slane %v427, %v431
    %v433 = vlaneseq
    %v434 = vshrl.u32 %v433, 7
    %v435 = vsub.s32 1, %v434
    %v436 = vrot.slane %v427, %v435
    %v437 = vlaneseq
    %v438 = vshrl.u32 %v437, 7
    %v439 = vsub.s32 2, %v438
    %v440 = vrot.slane %v427, %v439
    %v441 = vlaneseq
    %v442 = vshrl.u32 %v441, 7
    %v443 = vsub.s32 3, %v442
    %v444 = vrot.slane %v427, %v443
    %v449 = vadd.f32 %v418, %v432
    %v450 = vadd.f32 %v419, %v436
    %v451 = vadd.f32 %v420, %v440
    %v452 = vadd.f32 %v421, %v444
    %v453 = vadd.f32 %v422, %v432
    %v454 = vadd.f32 %v423, %v436
    %v455 = vadd.f32 %v424, %v440
    %v456 = vadd.f32 %v425, %v444
    %v457 = vmax.f32 %v449, 0.0
    %v458 = vmax.f32 %v450, 0.0
    %v459 = vmax.f32 %v451, 0.0
    %v460 = vmax.f32 %v452, 0.0
    %v461 = vmax.f32 %v453, 0.0
    %v462 = vmax.f32 %v454, 0.0
    %v463 = vmax.f32 %v455, 0.0
    %v464 = vmax.f32 %v456, 0.0
    %v465 = vpack.c.bf16 %v461, %v457
    %v466 = vpack.c.bf16 %v462, %v458
    %v467 = vpack.c.bf16 %v463, %v459
    %v468 = vpack.c.bf16 %v464, %v460
    %v469 = vld [vmem:[#allocation4] sm:$0xff]
    %v470 = vld [vmem:[#allocation4 + $0x8] sm:$0xf]
    %v471 = vld [vmem:[#allocation4 + $0xc] sm:$0xff]
    %v472 = vld [vmem:[#allocation4 + $0x14] sm:$0xf]
    %v473 = vld [vmem:[#allocation4 + $0x18] sm:$0xff]
    %v474 = vld [vmem:[#allocation4 + $0x20] sm:$0xf]
    %v475 = vld [vmem:[#allocation4 + $0x24] sm:$0xff]
    %v476 = vld [vmem:[#allocation4 + $0x2c] sm:$0xf]
    %v477 = vld [vmem:[#allocation4 + $0x30] sm:$0xff]
    %v478 = vld [vmem:[#allocation4 + $0x38] sm:$0xf]
    %v479 = vld [vmem:[#allocation4 + $0x3c] sm:$0xff]
    %v480 = vld [vmem:[#allocation4 + $0x44] sm:$0xf]
    %v481 = vld [vmem:[#allocation4 + $0x48] sm:$0xff]
    %v482 = vld [vmem:[#allocation4 + $0x50] sm:$0xf]
    %v483 = vld [vmem:[#allocation4 + $0x54] sm:$0xff]
    %v484 = vld [vmem:[#allocation4 + $0x5c] sm:$0xf]
    %v485 = vld [vmem:[#allocation4 + $0x60] sm:$0xff]
    %v486 = vld [vmem:[#allocation4 + $0x68] sm:$0xf]
    %v487 = vld [vmem:[#allocation4 + $0x6c] sm:$0xff]
    %v488 = vld [vmem:[#allocation4 + $0x74] sm:$0xf]
    %v489 = vld [vmem:[#allocation4 + $0x78] sm:$0xff]
    %v490 = vld [vmem:[#allocation4 + $0x80] sm:$0xf]
    %v491 = vld [vmem:[#allocation4 + $0x84] sm:$0xff]
    %v492 = vld [vmem:[#allocation4 + $0x8c] sm:$0xf]
    %v493 = vld [vmem:[#allocation4 + $0x90] sm:$0xff]
    %v494 = vld [vmem:[#allocation4 + $0x98] sm:$0xf]
    %v495 = vld [vmem:[#allocation4 + $0x9c] sm:$0xff]
    %v496 = vld [vmem:[#allocation4 + $0xa4] sm:$0xf]
    %v497 = vld [vmem:[#allocation4 + $0xa8] sm:$0xff]
    %v498 = vld [vmem:[#allocation4 + $0xb0] sm:$0xf]
    %v499 = vld [vmem:[#allocation4 + $0xb4] sm:$0xff]
    %v500 = vld [vmem:[#allocation4 + $0xbc] sm:$0xf]
    %v501 = vld [vmem:[#allocation4 + $0xc0] sm:$0xff]
    %v502 = vld [vmem:[#allocation4 + $0xc8] sm:$0xf]
    %v503 = vld [vmem:[#allocation4 + $0xcc] sm:$0xff]
    %v504 = vld [vmem:[#allocation4 + $0xd4] sm:$0xf]
    %v505 = vld [vmem:[#allocation4 + $0xd8] sm:$0xff]
    %v506 = vld [vmem:[#allocation4 + $0xe0] sm:$0xf]
    %v507 = vld [vmem:[#allocation4 + $0xe4] sm:$0xff]
    %v508 = vld [vmem:[#allocation4 + $0xec] sm:$0xf]
    %v509 = vld [vmem:[#allocation4 + $0xf0] sm:$0xff]
    %v510 = vld [vmem:[#allocation4 + $0xf8] sm:$0xf]
    %v511 = vld [vmem:[#allocation4 + $0xfc] sm:$0xff]
    %v512 = vld [vmem:[#allocation4 + $0x104] sm:$0xf]
    %v513 = vld [vmem:[#allocation4 + $0x108] sm:$0xff]
    %v514 = vld [vmem:[#allocation4 + $0x110] sm:$0xf]
    %v515 = vld [vmem:[#allocation4 + $0x114] sm:$0xff]
    %v516 = vld [vmem:[#allocation4 + $0x11c] sm:$0xf]
    %v517 = vld [vmem:[#allocation4 + $0x120] sm:$0xff]
    %v518 = vld [vmem:[#allocation4 + $0x128] sm:$0xf]
    %v519 = vld [vmem:[#allocation4 + $0x12c] sm:$0xff]
    %v520 = vld [vmem:[#allocation4 + $0x134] sm:$0xf]
    %v521 = vld [vmem:[#allocation4 + $0x138] sm:$0xff]
    %v522 = vld [vmem:[#allocation4 + $0x140] sm:$0xf]
    %v523 = vld [vmem:[#allocation4 + $0x144] sm:$0xff]
    %v524 = vld [vmem:[#allocation4 + $0x14c] sm:$0xf]
    %v525 = vld [vmem:[#allocation4 + $0x150] sm:$0xff]
    %v526 = vld [vmem:[#allocation4 + $0x158] sm:$0xf]
    %v527 = vld [vmem:[#allocation4 + $0x15c] sm:$0xff]
    %v528 = vld [vmem:[#allocation4 + $0x164] sm:$0xf]
    %v529 = vld [vmem:[#allocation4 + $0x168] sm:$0xff]
    %v530 = vld [vmem:[#allocation4 + $0x170] sm:$0xf]
    %v531 = vld [vmem:[#allocation4 + $0x174] sm:$0xff]
    %v532 = vld [vmem:[#allocation4 + $0x17c] sm:$0xf]
    %v533 = vld [vmem:[#allocation4 + $0x180] sm:$0xff]
    %v534 = vld [vmem:[#allocation4 + $0x188] sm:$0xf]
    %v535 = vld [vmem:[#allocation4 + $0x18c] sm:$0xff]
    %v536 = vld [vmem:[#allocation4 + $0x194] sm:$0xf]
    %v537 = vld [vmem:[#allocation4 + $0x198] sm:$0xff]
    %v538 = vld [vmem:[#allocation4 + $0x1a0] sm:$0xf]
    %v539 = vld [vmem:[#allocation4 + $0x1a4] sm:$0xff]
    %v540 = vld [vmem:[#allocation4 + $0x1ac] sm:$0xf]
    %v541 = vld [vmem:[#allocation4 + $0x1b0] sm:$0xff]
    %v542 = vld [vmem:[#allocation4 + $0x1b8] sm:$0xf]
    %v543 = vld [vmem:[#allocation4 + $0x1bc] sm:$0xff]
    %v544 = vld [vmem:[#allocation4 + $0x1c4] sm:$0xf]
    %v545 = vld [vmem:[#allocation4 + $0x1c8] sm:$0xff]
    %v546 = vld [vmem:[#allocation4 + $0x1d0] sm:$0xf]
    %v547 = vld [vmem:[#allocation4 + $0x1d4] sm:$0xff]
    %v548 = vld [vmem:[#allocation4 + $0x1dc] sm:$0xf]
    %v549 = vld [vmem:[#allocation4 + $0x1e0] sm:$0xff]
    %v550 = vld [vmem:[#allocation4 + $0x1e8] sm:$0xf]
    %v551 = vld [vmem:[#allocation4 + $0x1ec] sm:$0xff]
    %v552 = vld [vmem:[#allocation4 + $0x1f4] sm:$0xf]
    %v553 = vld [vmem:[#allocation4 + $0x1f8] sm:$0xff]
    %v554 = vld [vmem:[#allocation4 + $0x200] sm:$0xf]
    %v555 = vld [vmem:[#allocation4 + $0x204] sm:$0xff]
    %v556 = vld [vmem:[#allocation4 + $0x20c] sm:$0xf]
    %v557 = vld [vmem:[#allocation4 + $0x210] sm:$0xff]
    %v558 = vld [vmem:[#allocation4 + $0x218] sm:$0xf]
    %v559 = vld [vmem:[#allocation4 + $0x21c] sm:$0xff]
    %v560 = vld [vmem:[#allocation4 + $0x224] sm:$0xf]
    %v561 = vld [vmem:[#allocation4 + $0x228] sm:$0xff]
    %v562 = vld [vmem:[#allocation4 + $0x230] sm:$0xf]
    %v563 = vld [vmem:[#allocation4 + $0x234] sm:$0xff]
    %v564 = vld [vmem:[#allocation4 + $0x23c] sm:$0xf]
    %v565 = vld [vmem:[#allocation4 + $0x240] sm:$0xff]
    %v566 = vld [vmem:[#allocation4 + $0x248] sm:$0xf]
    %v567 = vld [vmem:[#allocation4 + $0x24c] sm:$0xff]
    %v568 = vld [vmem:[#allocation4 + $0x254] sm:$0xf]
    %v569 = vld [vmem:[#allocation4 + $0x258] sm:$0xff]
    %v570 = vld [vmem:[#allocation4 + $0x260] sm:$0xf]
    %v571 = vld [vmem:[#allocation4 + $0x264] sm:$0xff]
    %v572 = vld [vmem:[#allocation4 + $0x26c] sm:$0xf]
    %v573 = vld [vmem:[#allocation4 + $0x270] sm:$0xff]
    %v574 = vld [vmem:[#allocation4 + $0x278] sm:$0xf]
    %v575 = vld [vmem:[#allocation4 + $0x27c] sm:$0xff]
    %v576 = vld [vmem:[#allocation4 + $0x284] sm:$0xf]
    %v577 = vld [vmem:[#allocation4 + $0x288] sm:$0xff]
    %v578 = vld [vmem:[#allocation4 + $0x290] sm:$0xf]
    %v579 = vld [vmem:[#allocation4 + $0x294] sm:$0xff]
    %v580 = vld [vmem:[#allocation4 + $0x29c] sm:$0xf]
    %v581 = vld [vmem:[#allocation4 + $0x2a0] sm:$0xff]
    %v582 = vld [vmem:[#allocation4 + $0x2a8] sm:$0xf]
    %v583 = vld [vmem:[#allocation4 + $0x2ac] sm:$0xff]
    %v584 = vld [vmem:[#allocation4 + $0x2b4] sm:$0xf]
    %v585 = vld [vmem:[#allocation4 + $0x2b8] sm:$0xff]
    %v586 = vld [vmem:[#allocation4 + $0x2c0] sm:$0xf]
    %v587 = vld [vmem:[#allocation4 + $0x2c4] sm:$0xff]
    %v588 = vld [vmem:[#allocation4 + $0x2cc] sm:$0xf]
    %v589 = vld [vmem:[#allocation4 + $0x2d0] sm:$0xff]
    %v590 = vld [vmem:[#allocation4 + $0x2d8] sm:$0xf]
    %v591 = vld [vmem:[#allocation4 + $0x2dc] sm:$0xff]
    %v592 = vld [vmem:[#allocation4 + $0x2e4] sm:$0xf]
    %v593 = vld [vmem:[#allocation4 + $0x2e8] sm:$0xff]
    %v594 = vld [vmem:[#allocation4 + $0x2f0] sm:$0xf]
    %v595 = vld [vmem:[#allocation4 + $0x2f4] sm:$0xff]
    %v596 = vld [vmem:[#allocation4 + $0x2fc] sm:$0xf]
    %v597 = vld [vmem:[%s6] ss:$8 sm:$0x7]
    %v599 = vlaneseq
    %v600 = vshrl.u32 %v599, 7
    %v601 = vsub.s32 0, %v600
    %v602 = vrot.slane %v597, %v601
    %v603 = vlaneseq
    %v604 = vshrl.u32 %v603, 7
    %v605 = vsub.s32 1, %v604
    %v606 = vrot.slane %v597, %v605
    %v607 = vlaneseq
    %v608 = vshrl.u32 %v607, 7
    %v609 = vsub.s32 2, %v608
    %v610 = vrot.slane %v597, %v609
    %v742 = vunpack.c.l.b16 %v469
    %v743 = vunpack.c.h.b16 %v469
    %v744 = vunpack.c.l.b16 %v470
    %v745 = vunpack.c.l.b16 %v471
    %v746 = vunpack.c.h.b16 %v471
    %v747 = vunpack.c.l.b16 %v472
    %v748 = vunpack.c.l.b16 %v473
    %v749 = vunpack.c.h.b16 %v473
    %v750 = vunpack.c.l.b16 %v474
    %v751 = vunpack.c.l.b16 %v475
    %v752 = vunpack.c.h.b16 %v475
    %v753 = vunpack.c.l.b16 %v476
    %v754 = vunpack.c.l.b16 %v477
    %v755 = vunpack.c.h.b16 %v477
    %v756 = vunpack.c.l.b16 %v478
    %v757 = vunpack.c.l.b16 %v479
    %v758 = vunpack.c.h.b16 %v479
    %v759 = vunpack.c.l.b16 %v480
    %v760 = vunpack.c.l.b16 %v481
    %v761 = vunpack.c.h.b16 %v481
    %v762 = vunpack.c.l.b16 %v482
    %v763 = vunpack.c.l.b16 %v483
    %v764 = vunpack.c.h.b16 %v483
    %v765 = vunpack.c.l.b16 %v484
    %v766 = vunpack.c.l.b16 %v485
    %v767 = vunpack.c.h.b16 %v485
    %v768 = vunpack.c.l.b16 %v486
    %v769 = vunpack.c.l.b16 %v487
    %v770 = vunpack.c.h.b16 %v487
    %v771 = vunpack.c.l.b16 %v488
    %v772 = vunpack.c.l.b16 %v489
    %v773 = vunpack.c.h.b16 %v489
    %v774 = vunpack.c.l.b16 %v490
    %v775 = vunpack.c.l.b16 %v491
    %v776 = vunpack.c.h.b16 %v491
    %v777 = vunpack.c.l.b16 %v492
    %v778 = vunpack.c.l.b16 %v493
    %v779 = vunpack.c.h.b16 %v493
    %v780 = vunpack.c.l.b16 %v494
    %v781 = vunpack.c.l.b16 %v495
    %v782 = vunpack.c.h.b16 %v495
    %v783 = vunpack.c.l.b16 %v496
    %v784 = vunpack.c.l.b16 %v497
    %v785 = vunpack.c.h.b16 %v497
    %v786 = vunpack.c.l.b16 %v498
    %v787 = vunpack.c.l.b16 %v499
    %v788 = vunpack.c.h.b16 %v499
    %v789 = vunpack.c.l.b16 %v500
    %v790 = vunpack.c.l.b16 %v501
    %v791 = vunpack.c.h.b16 %v501
    %v792 = vunpack.c.l.b16 %v502
    %v793 = vunpack.c.l.b16 %v503
    %v794 = vunpack.c.h.b16 %v503
    %v795 = vunpack.c.l.b16 %v504
    %v796 = vunpack.c.l.b16 %v505
    %v797 = vunpack.c.h.b16 %v505
    %v798 = vunpack.c.l.b16 %v506
    %v799 = vunpack.c.l.b16 %v507
    %v800 = vunpack.c.h.b16 %v507
    %v801 = vunpack.c.l.b16 %v508
    %v802 = vunpack.c.l.b16 %v509
    %v803 = vunpack.c.h.b16 %v509
    %v804 = vunpack.c.l.b16 %v510
    %v805 = vunpack.c.l.b16 %v511
    %v806 = vunpack.c.h.b16 %v511
    %v807 = vunpack.c.l.b16 %v512
    %v808 = vunpack.c.l.b16 %v513
    %v809 = vunpack.c.h.b16 %v513
    %v810 = vunpack.c.l.b16 %v514
    %v811 = vunpack.c.l.b16 %v515
    %v812 = vunpack.c.h.b16 %v515
    %v813 = vunpack.c.l.b16 %v516
    %v814 = vunpack.c.l.b16 %v517
    %v815 = vunpack.c.h.b16 %v517
    %v816 = vunpack.c.l.b16 %v518
    %v817 = vunpack.c.l.b16 %v519
    %v818 = vunpack.c.h.b16 %v519
    %v819 = vunpack.c.l.b16 %v520
    %v820 = vunpack.c.l.b16 %v521
    %v821 = vunpack.c.h.b16 %v521
    %v822 = vunpack.c.l.b16 %v522
    %v823 = vunpack.c.l.b16 %v523
    %v824 = vunpack.c.h.b16 %v523
    %v825 = vunpack.c.l.b16 %v524
    %v826 = vunpack.c.l.b16 %v525
    %v827 = vunpack.c.h.b16 %v525
    %v828 = vunpack.c.l.b16 %v526
    %v829 = vunpack.c.l.b16 %v527
    %v830 = vunpack.c.h.b16 %v527
    %v831 = vunpack.c.l.b16 %v528
    %v832 = vunpack.c.l.b16 %v529
    %v833 = vunpack.c.h.b16 %v529
    %v834 = vunpack.c.l.b16 %v530
    %v835 = vunpack.c.l.b16 %v531
    %v836 = vunpack.c.h.b16 %v531
    %v837 = vunpack.c.l.b16 %v532
    %v838 = vunpack.c.l.b16 %v533
    %v839 = vunpack.c.h.b16 %v533
    %v840 = vunpack.c.l.b16 %v534
    %v841 = vunpack.c.l.b16 %v535
    %v842 = vunpack.c.h.b16 %v535
    %v843 = vunpack.c.l.b16 %v536
    %v844 = vunpack.c.l.b16 %v537
    %v845 = vunpack.c.h.b16 %v537
    %v846 = vunpack.c.l.b16 %v538
    %v847 = vunpack.c.l.b16 %v539
    %v848 = vunpack.c.h.b16 %v539
    %v849 = vunpack.c.l.b16 %v540
    %v850 = vunpack.c.l.b16 %v541
    %v851 = vunpack.c.h.b16 %v541
    %v852 = vunpack.c.l.b16 %v542
    %v853 = vunpack.c.l.b16 %v543
    %v854 = vunpack.c.h.b16 %v543
    %v855 = vunpack.c.l.b16 %v544
    %v856 = vunpack.c.l.b16 %v545
    %v857 = vunpack.c.h.b16 %v545
    %v858 = vunpack.c.l.b16 %v546
    %v859 = vunpack.c.l.b16 %v547
    %v860 = vunpack.c.h.b16 %v547
    %v861 = vunpack.c.l.b16 %v548
    %v862 = vunpack.c.l.b16 %v549
    %v863 = vunpack.c.h.b16 %v549
    %v864 = vunpack.c.l.b16 %v550
    %v865 = vunpack.c.l.b16 %v551
    %v866 = vunpack.c.h.b16 %v551
    %v867 = vunpack.c.l.b16 %v552
    %v868 = vunpack.c.l.b16 %v553
    %v869 = vunpack.c.h.b16 %v553
    %v870 = vunpack.c.l.b16 %v554
    %v871 = vunpack.c.l.b16 %v555
    %v872 = vunpack.c.h.b16 %v555
    %v873 = vunpack.c.l.b16 %v556
    %v874 = vunpack.c.l.b16 %v557
    %v875 = vunpack.c.h.b16 %v557
    %v876 = vunpack.c.l.b16 %v558
    %v877 = vunpack.c.l.b16 %v559
    %v878 = vunpack.c.h.b16 %v559
    %v879 = vunpack.c.l.b16 %v560
    %v880 = vunpack.c.l.b16 %v561
    %v881 = vunpack.c.h.b16 %v561
    %v882 = vunpack.c.l.b16 %v562
    %v883 = vunpack.c.l.b16 %v563
    %v884 = vunpack.c.h.b16 %v563
    %v885 = vunpack.c.l.b16 %v564
    %v886 = vunpack.c.l.b16 %v565
    %v887 = vunpack.c.h.b16 %v565
    %v888 = vunpack.c.l.b16 %v566
    %v889 = vunpack.c.l.b16 %v567
    %v890 = vunpack.c.h.b16 %v567
    %v891 = vunpack.c.l.b16 %v568
    %v892 = vunpack.c.l.b16 %v569
    %v893 = vunpack.c.h.b16 %v569
    %v894 = vunpack.c.l.b16 %v570
    %v895 = vunpack.c.l.b16 %v571
    %v896 = vunpack.c.h.b16 %v571
    %v897 = vunpack.c.l.b16 %v572
    %v898 = vunpack.c.l.b16 %v573
    %v899 = vunpack.c.h.b16 %v573
    %v900 = vunpack.c.l.b16 %v574
    %v901 = vunpack.c.l.b16 %v575
    %v902 = vunpack.c.h.b16 %v575
    %v903 = vunpack.c.l.b16 %v576
    %v904 = vunpack.c.l.b16 %v577
    %v905 = vunpack.c.h.b16 %v577
    %v906 = vunpack.c.l.b16 %v578
    %v907 = vunpack.c.l.b16 %v579
    %v908 = vunpack.c.h.b16 %v579
    %v909 = vunpack.c.l.b16 %v580
    %v910 = vunpack.c.l.b16 %v581
    %v911 = vunpack.c.h.b16 %v581
    %v912 = vunpack.c.l.b16 %v582
    %v913 = vunpack.c.l.b16 %v583
    %v914 = vunpack.c.h.b16 %v583
    %v915 = vunpack.c.l.b16 %v584
    %v916 = vunpack.c.l.b16 %v585
    %v917 = vunpack.c.h.b16 %v585
    %v918 = vunpack.c.l.b16 %v586
    %v919 = vunpack.c.l.b16 %v587
    %v920 = vunpack.c.h.b16 %v587
    %v921 = vunpack.c.l.b16 %v588
    %v922 = vunpack.c.l.b16 %v589
    %v923 = vunpack.c.h.b16 %v589
    %v924 = vunpack.c.l.b16 %v590
    %v925 = vunpack.c.l.b16 %v591
    %v926 = vunpack.c.h.b16 %v591
    %v927 = vunpack.c.l.b16 %v592
    %v928 = vunpack.c.l.b16 %v593
    %v929 = vunpack.c.h.b16 %v593
    %v930 = vunpack.c.l.b16 %v594
    %v931 = vunpack.c.l.b16 %v595
    %v932 = vunpack.c.h.b16 %v595
    %v933 = vunpack.c.l.b16 %v596
    %v934 = vpack.c.b16 %v745, %v742
    %v935 = vpack.c.b16 %v746, %v743
    %v936 = vpack.c.b16 %v747, %v744
    %v937 = vpack.c.b16 %v751, %v748
    %v938 = vpack.c.b16 %v752, %v749
    %v939 = vpack.c.b16 %v753, %v750
    %v940 = vpack.c.b16 %v757, %v754
    %v941 = vpack.c.b16 %v758, %v755
    %v942 = vpack.c.b16 %v759, %v756
    %v943 = vpack.c.b16 %v763, %v760
    %v944 = vpack.c.b16 %v764, %v761
    %v945 = vpack.c.b16 %v765, %v762
    %v946 = vpack.c.b16 %v769, %v766
    %v947 = vpack.c.b16 %v770, %v767
    %v948 = vpack.c.b16 %v771, %v768
    %v949 = vpack.c.b16 %v775, %v772
    %v950 = vpack.c.b16 %v776, %v773
    %v951 = vpack.c.b16 %v777, %v774
    %v952 = vpack.c.b16 %v781, %v778
    %v953 = vpack.c.b16 %v782, %v779
    %v954 = vpack.c.b16 %v783, %v780
    %v955 = vpack.c.b16 %v787, %v784
    %v956 = vpack.c.b16 %v788, %v785
    %v957 = vpack.c.b16 %v789, %v786
    %v958 = vpack.c.b16 %v793, %v790
    %v959 = vpack.c.b16 %v794, %v791
    %v960 = vpack.c.b16 %v795, %v792
    %v961 = vpack.c.b16 %v799, %v796
    %v962 = vpack.c.b16 %v800, %v797
    %v963 = vpack.c.b16 %v801, %v798
    %v964 = vpack.c.b16 %v805, %v802
    %v965 = vpack.c.b16 %v806, %v803
    %v966 = vpack.c.b16 %v807, %v804
    %v967 = vpack.c.b16 %v811, %v808
    %v968 = vpack.c.b16 %v812, %v809
    %v969 = vpack.c.b16 %v813, %v810
    %v970 = vpack.c.b16 %v817, %v814
    %v971 = vpack.c.b16 %v818, %v815
    %v972 = vpack.c.b16 %v819, %v816
    %v973 = vpack.c.b16 %v823, %v820
    %v974 = vpack.c.b16 %v824, %v821
    %v975 = vpack.c.b16 %v825, %v822
    %v976 = vpack.c.b16 %v829, %v826
    %v977 = vpack.c.b16 %v830, %v827
    %v978 = vpack.c.b16 %v831, %v828
    %v979 = vpack.c.b16 %v835, %v832
    %v980 = vpack.c.b16 %v836, %v833
    %v981 = vpack.c.b16 %v837, %v834
    %v982 = vpack.c.b16 %v841, %v838
    %v983 = vpack.c.b16 %v842, %v839
    %v984 = vpack.c.b16 %v843, %v840
    %v985 = vpack.c.b16 %v847, %v844
    %v986 = vpack.c.b16 %v848, %v845
    %v987 = vpack.c.b16 %v849, %v846
    %v988 = vpack.c.b16 %v853, %v850
    %v989 = vpack.c.b16 %v854, %v851
    %v990 = vpack.c.b16 %v855, %v852
    %v991 = vpack.c.b16 %v859, %v856
    %v992 = vpack.c.b16 %v860, %v857
    %v993 = vpack.c.b16 %v861, %v858
    %v994 = vpack.c.b16 %v865, %v862
    %v995 = vpack.c.b16 %v866, %v863
    %v996 = vpack.c.b16 %v867, %v864
    %v997 = vpack.c.b16 %v871, %v868
    %v998 = vpack.c.b16 %v872, %v869
    %v999 = vpack.c.b16 %v873, %v870
    %v1000 = vpack.c.b16 %v877, %v874
    %v1001 = vpack.c.b16 %v878, %v875
    %v1002 = vpack.c.b16 %v879, %v876
    %v1003 = vpack.c.b16 %v883, %v880
    %v1004 = vpack.c.b16 %v884, %v881
    %v1005 = vpack.c.b16 %v885, %v882
    %v1006 = vpack.c.b16 %v889, %v886
    %v1007 = vpack.c.b16 %v890, %v887
    %v1008 = vpack.c.b16 %v891, %v888
    %v1009 = vpack.c.b16 %v895, %v892
    %v1010 = vpack.c.b16 %v896, %v893
    %v1011 = vpack.c.b16 %v897, %v894
    %v1012 = vpack.c.b16 %v901, %v898
    %v1013 = vpack.c.b16 %v902, %v899
    %v1014 = vpack.c.b16 %v903, %v900
    %v1015 = vpack.c.b16 %v907, %v904
    %v1016 = vpack.c.b16 %v908, %v905
    %v1017 = vpack.c.b16 %v909, %v906
    %v1018 = vpack.c.b16 %v913, %v910
    %v1019 = vpack.c.b16 %v914, %v911
    %v1020 = vpack.c.b16 %v915, %v912
    %v1021 = vpack.c.b16 %v919, %v916
    %v1022 = vpack.c.b16 %v920, %v917
    %v1023 = vpack.c.b16 %v921, %v918
    %v1024 = vpack.c.b16 %v925, %v922
    %v1025 = vpack.c.b16 %v926, %v923
    %v1026 = vpack.c.b16 %v927, %v924
    %v1027 = vpack.c.b16 %v931, %v928
    %v1028 = vpack.c.b16 %v932, %v929
    %v1029 = vpack.c.b16 %v933, %v930
    %1126 = vmatprep.subr.bf16.mxu0 %v935
    %1127 = vmatpush1.bf16.msra.mxu0 %v934
    %1128 = vmatprep.subr.bf16.mxu0 %v938
    %1129 = vmatpush1.bf16.msra.mxu0 %v937
    %1130 = vmatprep.subr.bf16.mxu0 %v941
    %1131 = vmatpush1.bf16.msra.mxu0 %v940
    %1132 = vmatprep.subr.bf16.mxu0 %v944
    %1133 = vmatpush1.bf16.msra.mxu0 %v943
    %1134 = vmatprep.subr.bf16.mxu0 %v947
    %1135 = vmatpush1.bf16.msra.mxu0 %v946
    %1136 = vmatprep.subr.bf16.mxu0 %v950
    %1137 = vmatpush1.bf16.msra.mxu0 %v949
    %1138 = vmatprep.subr.bf16.mxu0 %v953
    %1139 = vmatpush1.bf16.msra.mxu0 %v952
    %1140 = vmatprep.subr.bf16.mxu0 %v956
    %1141 = vmatpush1.bf16.msra.mxu0 %v955
    %1142 = vmatprep.subr.bf16.mxu0 %v959
    %1143 = vmatpush1.bf16.msra.mxu0 %v958
    %1144 = vmatprep.subr.bf16.mxu0 %v962
    %1145 = vmatpush1.bf16.msra.mxu0 %v961
    %1146 = vmatprep.subr.bf16.mxu0 %v965
    %1147 = vmatpush1.bf16.msra.mxu0 %v964
    %1148 = vmatprep.subr.bf16.mxu0 %v968
    %1149 = vmatpush1.bf16.msra.mxu0 %v967
    %1150 = vmatprep.subr.bf16.mxu0 %v971
    %1151 = vmatpush1.bf16.msra.mxu0 %v970
    %1152 = vmatprep.subr.bf16.mxu0 %v974
    %1153 = vmatpush1.bf16.msra.mxu0 %v973
    %1154 = vmatprep.subr.bf16.mxu0 %v977
    %1155 = vmatpush1.bf16.msra.mxu0 %v976
    %1156 = vmatprep.subr.bf16.mxu0 %v980
    %1157 = vmatpush1.bf16.msra.mxu0 %v979
    %1158 = vmatprep.mubr.bf16.mxu0 %v466
    %1159 = vmatmul.mubr.bf16.gmra.mrb[0].mxu0 %v465
    %v1160 = vpop.f32.mrb[0].mxu0
    %v1161 = vadd.f32 %v602, %v1160
    %v1162 = vpop.f32.mrb[0].mxu0
    %v1163 = vadd.f32 %v606, %v1162
    %v1164 = vpop.f32.mrb[0].mxu0
    %v1165 = vadd.f32 %v602, %v1164
    %v1166 = vpop.f32.mrb[0].mxu0
    %v1167 = vadd.f32 %v606, %v1166
    %1168 = vdwg.mxu0
    %1169 = vmatprep.subr.bf16.mxu0 %v983
    %1170 = vmatpush1.bf16.msra.mxu0 %v982
    %1171 = vmatprep.subr.bf16.mxu0 %v986
    %1172 = vmatpush1.bf16.msra.mxu0 %v985
    %1173 = vmatprep.subr.bf16.mxu0 %v989
    %1174 = vmatpush1.bf16.msra.mxu0 %v988
    %1175 = vmatprep.subr.bf16.mxu0 %v992
    %1176 = vmatpush1.bf16.msra.mxu0 %v991
    %1177 = vmatprep.subr.bf16.mxu0 %v995
    %1178 = vmatpush1.bf16.msra.mxu0 %v994
    %1179 = vmatprep.subr.bf16.mxu0 %v998
    %1180 = vmatpush1.bf16.msra.mxu0 %v997
    %1181 = vmatprep.subr.bf16.mxu0 %v1001
    %1182 = vmatpush1.bf16.msra.mxu0 %v1000
    %1183 = vmatprep.subr.bf16.mxu0 %v1004
    %1184 = vmatpush1.bf16.msra.mxu0 %v1003
    %1185 = vmatprep.subr.bf16.mxu0 %v1007
    %1186 = vmatpush1.bf16.msra.mxu0 %v1006
    %1187 = vmatprep.subr.bf16.mxu0 %v1010
    %1188 = vmatpush1.bf16.msra.mxu0 %v1009
    %1189 = vmatprep.subr.bf16.mxu0 %v1013
    %1190 = vmatpush1.bf16.msra.mxu0 %v1012
    %1191 = vmatprep.subr.bf16.mxu0 %v1016
    %1192 = vmatpush1.bf16.msra.mxu0 %v1015
    %1193 = vmatprep.subr.bf16.mxu0 %v1019
    %1194 = vmatpush1.bf16.msra.mxu0 %v1018
    %1195 = vmatprep.subr.bf16.mxu0 %v1022
    %1196 = vmatpush1.bf16.msra.mxu0 %v1021
    %1197 = vmatprep.subr.bf16.mxu0 %v1025
    %1198 = vmatpush1.bf16.msra.mxu0 %v1024
    %1199 = vmatprep.subr.bf16.mxu0 %v1028
    %1200 = vmatpush1.bf16.msra.mxu0 %v1027
    %1201 = vmatprep.mubr.bf16.mxu0 %v468
    %1202 = vmatmul.mubr.bf16.gmra.mrb[0].mxu0 %v467
    %v1203 = vpop.f32.mrb[0].mxu0
    %v1204 = vadd.f32 %v1161, %v1203
    %v1205 = vpop.f32.mrb[0].mxu0
    %v1206 = vadd.f32 %v1163, %v1205
    %v1207 = vpop.f32.mrb[0].mxu0
    %v1208 = vadd.f32 %v1165, %v1207
    %v1209 = vpop.f32.mrb[0].mxu0
    %v1210 = vadd.f32 %v1167, %v1209
    %1211 = vdwg.mxu0
    %1212 = vmatprep.subr.bf16.mxu0 0
    %1213 = vmatpush1.bf16.msra.mxu0 %v936
    %1214 = vmatprep.subr.bf16.mxu0 0
    %1215 = vmatpush1.bf16.msra.mxu0 %v939
    %1216 = vmatprep.subr.bf16.mxu0 0
    %1217 = vmatpush1.bf16.msra.mxu0 %v942
    %1218 = vmatprep.subr.bf16.mxu0 0
    %1219 = vmatpush1.bf16.msra.mxu0 %v945
    %1220 = vmatprep.subr.bf16.mxu0 0
    %1221 = vmatpush1.bf16.msra.mxu0 %v948
    %1222 = vmatprep.subr.bf16.mxu0 0
    %1223 = vmatpush1.bf16.msra.mxu0 %v951
    %1224 = vmatprep.subr.bf16.mxu0 0
    %1225 = vmatpush1.bf16.msra.mxu0 %v954
    %1226 = vmatprep.subr.bf16.mxu0 0
    %1227 = vmatpush1.bf16.msra.mxu0 %v957
    %1228 = vmatprep.subr.bf16.mxu0 0
    %1229 = vmatpush1.bf16.msra.mxu0 %v960
    %1230 = vmatprep.subr.bf16.mxu0 0
    %1231 = vmatpush1.bf16.msra.mxu0 %v963
    %1232 = vmatprep.subr.bf16.mxu0 0
    %1233 = vmatpush1.bf16.msra.mxu0 %v966
    %1234 = vmatprep.subr.bf16.mxu0 0
    %1235 = vmatpush1.bf16.msra.mxu0 %v969
    %1236 = vmatprep.subr.bf16.mxu0 0
    %1237 = vmatpush1.bf16.msra.mxu0 %v972
    %1238 = vmatprep.subr.bf16.mxu0 0
    %1239 = vmatpush1.bf16.msra.mxu0 %v975
    %1240 = vmatprep.subr.bf16.mxu0 0
    %1241 = vmatpush1.bf16.msra.mxu0 %v978
    %1242 = vmatprep.subr.bf16.mxu0 0
    %1243 = vmatpush1.bf16.msra.mxu0 %v981
    %1244 = vmatprep.mubr.bf16.mxu0 %v466
    %1245 = vmatmul.mubr.bf16.gmra.mrb[0].mxu0 %v465
    %v1246 = vpop.f32.mrb[0].mxu0
    %v1247 = vadd.f32 %v610, %v1246
    %v1248 = vpop.f32.mrb[0].mxu0
    %v1249 = vpop.f32.mrb[0].mxu0
    %v1250 = vadd.f32 %v610, %v1249
    %v1251 = vpop.f32.mrb[0].mxu0
    %1252 = vdwg.mxu0
    %1253 = vmatprep.subr.bf16.mxu0 0
    %1254 = vmatpush1.bf16.msra.mxu0 %v984
    %1255 = vmatprep.subr.bf16.mxu0 0
    %1256 = vmatpush1.bf16.msra.mxu0 %v987
    %1257 = vmatprep.subr.bf16.mxu0 0
    %1258 = vmatpush1.bf16.msra.mxu0 %v990
    %1259 = vmatprep.subr.bf16.mxu0 0
    %1260 = vmatpush1.bf16.msra.mxu0 %v993
    %1261 = vmatprep.subr.bf16.mxu0 0
    %1262 = vmatpush1.bf16.msra.mxu0 %v996
    %1263 = vmatprep.subr.bf16.mxu0 0
    %1264 = vmatpush1.bf16.msra.mxu0 %v999
    %1265 = vmatprep.subr.bf16.mxu0 0
    %1266 = vmatpush1.bf16.msra.mxu0 %v1002
    %1267 = vmatprep.subr.bf16.mxu0 0
    %1268 = vmatpush1.bf16.msra.mxu0 %v1005
    %1269 = vmatprep.subr.bf16.mxu0 0
    %1270 = vmatpush1.bf16.msra.mxu0 %v1008
    %1271 = vmatprep.subr.bf16.mxu0 0
    %1272 = vmatpush1.bf16.msra.mxu0 %v1011
    %1273 = vmatprep.subr.bf16.mxu0 0
    %1274 = vmatpush1.bf16.msra.mxu0 %v1014
    %1275 = vmatprep.subr.bf16.mxu0 0
    %1276 = vmatpush1.bf16.msra.mxu0 %v1017
    %1277 = vmatprep.subr.bf16.mxu0 0
    %1278 = vmatpush1.bf16.msra.mxu0 %v1020
    %1279 = vmatprep.subr.bf16.mxu0 0
    %1280 = vmatpush1.bf16.msra.mxu0 %v1023
    %1281 = vmatprep.subr.bf16.mxu0 0
    %1282 = vmatpush1.bf16.msra.mxu0 %v1026
    %1283 = vmatprep.subr.bf16.mxu0 0
    %1284 = vmatpush1.bf16.msra.mxu0 %v1029
    %1285 = vmatprep.mubr.bf16.mxu0 %v468
    %1286 = vmatmul.mubr.bf16.gmra.mrb[0].mxu0 %v467
    %v1287 = vpop.f32.mrb[0].mxu0
    %v1288 = vadd.f32 %v1247, %v1287
    %v1289 = vpop.f32.mrb[0].mxu0
    %v1290 = vpop.f32.mrb[0].mxu0
    %v1291 = vadd.f32 %v1250, %v1290
    %v1292 = vpop.f32.mrb[0].mxu0
    %1293 = vdwg.mxu0
    %v1294 = vadd.f32 %v1204, %v1206
    %v1295 = vadd.f32 %v1294, %v1288
    %1296 = vadd.xlane.f32.xlu0 %v1295
    %v1297 = vpop.xlane.xlu0 %1296
    %v1298 = vadd.f32 %v1208, %v1210
    %v1299 = vadd.f32 %v1298, %v1291
    %1300 = vadd.xlane.f32.xlu0 %v1299
    %v1301 = vpop.xlane.xlu0 %1300
    %v1302 = vmul.f32 %v1204, %v1204
    %v1303 = vmul.f32 %v1206, %v1206
    %v1304 = vmul.f32 %v1288, %v1288
    %v1305 = vmul.f32 %v1208, %v1208
    %v1306 = vmul.f32 %v1210, %v1210
    %v1307 = vmul.f32 %v1291, %v1291
    %v1308 = vadd.f32 %v1302, %v1303
    %v1309 = vadd.f32 %v1308, %v1304
    %1310 = vadd.xlane.f32.xlu0 %v1309
    %v1311 = vpop.xlane.xlu0 %1310
    %v1312 = vadd.f32 %v1305, %v1306
    %v1313 = vadd.f32 %v1312, %v1307
    %1314 = vadd.xlane.f32.xlu0 %v1313
    %v1315 = vpop.xlane.xlu0 %1314
    %v1316 = vmul.f32 %v1297, 0.0033333334
    %v1317 = vmul.f32 %v1301, 0.0033333334
    %v1318 = vmul.f32 %v1311, 0.0033333334
    %v1319 = vmul.f32 %v1315, 0.0033333334
    %v1320 = vmul.f32 %v1316, %v1316
    %v1321 = vmul.f32 %v1317, %v1317
    %v1322 = vsub.f32 %v1318, %v1320
    %v1323 = vsub.f32 %v1319, %v1321
    %v1324 = vmax.f32 %v1322, 0.0
    %v1325 = vmax.f32 %v1323, 0.0
    %v1326 = vsub.f32 %v1204, %v1316
    %v1327 = vsub.f32 %v1206, %v1316
    %v1328 = vsub.f32 %v1288, %v1316
    %v1329 = vsub.f32 %v1208, %v1317
    %v1330 = vsub.f32 %v1210, %v1317
    %v1331 = vsub.f32 %v1291, %v1317
    %v1332 = vadd.f32 %v1324, 1e-05
    %v1333 = vadd.f32 %v1325, 1e-05
    %v1334 = vrsqrt.pop %v1332
    %v1335 = vrsqrt.pop %v1333
    %v1336 = vmul.f32 %v1326, %v1334
    %v1337 = vmul.f32 %v1327, %v1334
    %v1338 = vmul.f32 %v1328, %v1334
    %v1339 = vmul.f32 %v1329, %v1335
    %v1340 = vmul.f32 %v1330, %v1335
    %v1341 = vmul.f32 %v1331, %v1335
    %s1342 = scalar_lea.vmem %s6, 1
    %v1343 = vld [vmem:[%s1342] ss:$8 sm:$0x7]
    %v1345 = vlaneseq
    %v1346 = vshrl.u32 %v1345, 7
    %v1347 = vsub.s32 0, %v1346
    %v1348 = vrot.slane %v1343, %v1347
    %v1349 = vlaneseq
    %v1350 = vshrl.u32 %v1349, 7
    %v1351 = vsub.s32 1, %v1350
    %v1352 = vrot.slane %v1343, %v1351
    %v1353 = vlaneseq
    %v1354 = vshrl.u32 %v1353, 7
    %v1355 = vsub.s32 2, %v1354
    %v1356 = vrot.slane %v1343, %v1355
    %v1360 = vmul.f32 %v1336, %v1348
    %v1361 = vmul.f32 %v1337, %v1352
    %v1362 = vmul.f32 %v1338, %v1356
    %v1363 = vmul.f32 %v1339, %v1348
    %v1364 = vmul.f32 %v1340, %v1352
    %v1365 = vmul.f32 %v1341, %v1356
    %s1366 = scalar_lea.vmem %s6, 2
    %v1367 = vld [vmem:[%s1366] ss:$8 sm:$0x7]
    %v1369 = vlaneseq
    %v1370 = vshrl.u32 %v1369, 7
    %v1371 = vsub.s32 0, %v1370
    %v1372 = vrot.slane %v1367, %v1371
    %v1373 = vlaneseq
    %v1374 = vshrl.u32 %v1373, 7
    %v1375 = vsub.s32 1, %v1374
    %v1376 = vrot.slane %v1367, %v1375
    %v1377 = vlaneseq
    %v1378 = vshrl.u32 %v1377, 7
    %v1379 = vsub.s32 2, %v1378
    %v1380 = vrot.slane %v1367, %v1379
    %v1384 = vadd.f32 %v1360, %v1372
    %v1385 = vadd.f32 %v1361, %v1376
    %v1386 = vadd.f32 %v1362, %v1380
    %v1387 = vadd.f32 %v1363, %v1372
    %v1388 = vadd.f32 %v1364, %v1376
    %v1389 = vadd.f32 %v1365, %v1380
    %v1390 = vmax.f32 %v288, 0.0
    %v1391 = vmax.f32 %v290, 0.0
    %v1392 = vmax.f32 %v331, 0.0
    %v1393 = vmax.f32 %v292, 0.0
    %v1394 = vmax.f32 %v294, 0.0
    %v1395 = vmax.f32 %v334, 0.0
    %v1396 = vadd.f32 %v1384, %v1390
    %v1397 = vadd.f32 %v1385, %v1391
    %v1398 = vadd.f32 %v1386, %v1392
    %v1399 = vadd.f32 %v1387, %v1393
    %v1400 = vadd.f32 %v1388, %v1394
    %v1401 = vadd.f32 %v1389, %v1395
    %v1402 = vmax.f32 %v1396, 0.0
    %v1403 = vmax.f32 %v1397, 0.0
    %v1404 = vmax.f32 %v1398, 0.0
    %v1405 = vmax.f32 %v1399, 0.0
    %v1406 = vmax.f32 %v1400, 0.0
    %v1407 = vmax.f32 %v1401, 0.0
    %s1408 = scalar_lea.vmem %s6, 4
    %v1409 = vld [vmem:[%s1408] ss:$8 sm:$0x7]
    %v1411 = vlaneseq
    %v1412 = vshrl.u32 %v1411, 7
    %v1413 = vsub.s32 0, %v1412
    %v1414 = vrot.slane %v1409, %v1413
    %v1415 = vlaneseq
    %v1416 = vshrl.u32 %v1415, 7
    %v1417 = vsub.s32 1, %v1416
    %v1418 = vrot.slane %v1409, %v1417
    %v1419 = vlaneseq
    %v1420 = vshrl.u32 %v1419, 7
    %v1421 = vsub.s32 2, %v1420
    %v1422 = vrot.slane %v1409, %v1421
    %v1426 = vmul.f32 %v1402, %v1414
    %v1427 = vmul.f32 %v1403, %v1418
    %v1428 = vmul.f32 %v1404, %v1422
    %v1429 = vmul.f32 %v1405, %v1414
    %v1430 = vmul.f32 %v1406, %v1418
    %v1431 = vmul.f32 %v1407, %v1422
    %v1432 = vadd.f32 %v1426, %v1427
    %v1433 = vadd.f32 %v1432, %v1428
    %1434 = vadd.xlane.f32.xlu0 %v1433
    %v1435 = vpop.xlane.xlu0 %1434
    %v1436 = vadd.f32 %v1429, %v1430
    %v1437 = vadd.f32 %v1436, %v1431
    %1438 = vadd.xlane.f32.xlu0 %v1437
    %v1439 = vpop.xlane.xlu0 %1438
    %v1440 = vld [vmem:[%s6 + $0x5] ss:$0 sm:$0xff]
    %v1441 = vadd.f32 %v1435, %v1440
    %v1442 = vadd.f32 %v1439, %v1440
    %vm1443 = vcmask 7168
    %1444 = vst.msk [vmem:[%s7] sm:$0xff] %vm1443, %v1441
    %1445 = vst.msk [vmem:[%s7 + $0x8] sm:$0xff] %vm1443, %v1442
    // Predicated region
    $region38: #{tpu_custom_call.1} parent=1 // pred_check
      _
    $region39: #{tpu_custom_call.1} parent=1 // pred_check_branch
      %1447 = sbr.rel (0) target = $region41
    $region40: #{tpu_custom_call.1} parent=1 // pred_region
      _
    $region41: #{tpu_custom_call.1} parent=1 // pred_fallthru
      _
    // Predicated region
    $region42: #{tpu_custom_call.1} parent=1 // pred_check
      _
    $region43: #{tpu_custom_call.1} parent=1 // pred_check_branch
      %1449 = sbr.rel (0) target = $region45
    $region44: #{tpu_custom_call.1} parent=1 // pred_region
      _
    $region45: #{tpu_custom_call.1} parent=1 // pred_fallthru
      _
    %1450 = vsyncpa [#allocation3], 1
    %1451 = vsyncpa [#allocation5], 1

</llo_original>
